<compile_context>
chip_gen: v5e
topology: v5e:2x2
jax: 0.10.0
libtpu: 0.0.40
codegen_flags: <defaults>
</compile_context>

<pallas_src>
import functools

import jax
import jax.numpy as jnp
from jax import lax
from jax.experimental import pallas as pl
from jax.experimental.pallas import tpu as pltpu


def lstm_kernel(*refs, num_layers, seq_len, hidden, batch_tile,
                out_features, matmul_dtype):
    """Full LSTM stack + final Linear for one batch tile, resident in VMEM.

    Refs (in order):
      x_ref:      (T*B, I)        time-major, flattened: rows [t*B, (t+1)*B)
      w_ih0_ref:  (I, 4H)         layer-0 input weights (transposed)
      w_hh0_ref:  (H, 4H)         layer-0 recurrent weights (transposed)
      b0_ref:     (1, 4H)         layer-0 combined bias (b_ih + b_hh)
      [only if num_layers > 1:]
      w_ih_r_ref: (L-1, H, 4H)    layers 1..L-1 input weights (transposed)
      w_hh_r_ref: (L-1, H, 4H)
      b_r_ref:    (L-1, 1, 4H)
      w_lin_ref:  (1, H) if O==1 else (H, O)
      b_lin_ref:  (1, O)
      out_ref:    (B, O)
      [scratch]
      seq_ref:    (T*B, H)  hidden sequence feeding the next layer (L > 1 only)
      pg_ref:     (T*B, 4H) pre-computed input projections (pregates)
    """
    T, B, H = seq_len, batch_tile, hidden
    G = 4 * H

    if num_layers > 1:
        (x_ref, w_ih0_ref, w_hh0_ref, b0_ref,
         w_ih_r_ref, w_hh_r_ref, b_r_ref,
         w_lin_ref, b_lin_ref, out_ref, seq_ref, pg_ref) = refs
    else:
        (x_ref, w_ih0_ref, w_hh0_ref, b0_ref,
         w_lin_ref, b_lin_ref, out_ref, pg_ref) = refs
        w_ih_r_ref = w_hh_r_ref = b_r_ref = seq_ref = None

    # Hoisted lane constants selecting the tanh ('g') gate block, lanes [2H,3H).
    # sigmoid(x) = 0.5*tanh(0.5*x) + 0.5 -> one EUP pass per step:
    #   t = tanh(gates * gate_scale);  act = t * gate_scale + gate_off
    lane = lax.broadcasted_iota(jnp.int32, (B, G), 1)
    g_lane = jnp.logical_and(lane >= 2 * H, lane < 3 * H)
    gate_scale = jnp.where(g_lane, 1.0, 0.5).astype(jnp.float32)
    gate_off = jnp.where(g_lane, 0.0, 0.5).astype(jnp.float32)

    def run_layer(inp_flat, w_ihT, w_hhT, b, write_seq):
        # (1) Batched input projection for ALL timesteps at once (off the
        #     serial chain), bias folded in: (T*B, K) @ (K, 4H) + (1, 4H).
        pg_ref[...] = jnp.dot(inp_flat.astype(matmul_dtype), w_ihT,
                              preferred_element_type=jnp.float32) + b

        # (2) Serial recurrence: one (B,H)@(H,4H) MXU op per step.  Fully
        #     unrolled (T static & small) so all pg/seq accesses are static
        #     and the LLO scheduler overlaps work across steps.
        # TODO(synk): pin w_hhT in MXU weight/staging registers across the T
        # steps (pltpu.matmul_push_rhs once + matmul_acc_lhs/matmul_pop per
        # step; in-place MRB accumulate on v7x); kept on jnp.dot here for
        # portability/robustness across v5e/v6e (MRF) and v7x (MRB).
        # TODO(synk): for large T switch to lax.fori_loop(..., unroll=4..8)
        # to bound vreg live ranges / instruction memory.
        h = jnp.zeros((B, H), jnp.float32)
        c = jnp.zeros((B, H), jnp.float32)
        for t in range(T):
            rows = pl.ds(t * B, B)
            gates = pg_ref[rows, :] + jnp.dot(
                h.astype(matmul_dtype), w_hhT,
                preferred_element_type=jnp.float32)
            # Single full-vreg tanh (EUP) + VPU affine fixup for sigmoid lanes.
            tg = jnp.tanh(gates * gate_scale)
            act = tg * gate_scale + gate_off
            i_g = act[:, 0 * H:1 * H]
            f_g = act[:, 1 * H:2 * H]
            g_g = act[:, 2 * H:3 * H]
            o_g = act[:, 3 * H:4 * H]
            c = f_g * c + i_g * g_g
            h = o_g * jnp.tanh(c)
            if write_seq:                      # skip stores on the last layer
                seq_ref[rows, :] = h
        return h

    # ---------------- layer 0 (input size I) ----------------
    h = run_layer(x_ref[...], w_ih0_ref[...], w_hh0_ref[...], b0_ref[...],
                  write_seq=(num_layers > 1))

    # ---------------- layers 1 .. L-1 (input size H) ----------------
    for layer in range(1, num_layers):
        h = run_layer(seq_ref[...], w_ih_r_ref[layer - 1],
                      w_hh_r_ref[layer - 1], b_r_ref[layer - 1],
                      write_seq=(layer < num_layers - 1))

    # ---------------- final Linear on last-timestep hidden state ------------
    if out_features == 1:
        # O=1: VPU multiply + row reduction instead of a 1-lane MXU matmul.
        out_ref[...] = (jnp.sum(h * w_lin_ref[...], axis=-1, keepdims=True)
                        + b_lin_ref[...])
    else:
        out_ref[...] = (jnp.dot(h.astype(matmul_dtype), w_lin_ref[...],
                                preferred_element_type=jnp.float32)
                        + b_lin_ref[...])


def _pick_batch_tile(B, *, mxu_rows=256, min_rows_for_split=128):
    """Fill the MXU row dimension first (the per-step recurrent matmul has
    ~fixed pipeline latency up to full MXU rows), then split leftover batch
    across grid tiles; the parallel grid axis shards tiles across
    TensorCores (megacore / v7x dual-TC)."""
    if B <= mxu_rows:
        # If both halves still fill >= min_rows_for_split MXU rows, prefer
        # two tiles so a dual-TC chip (v7x) keeps both cores busy.
        if B >= 2 * min_rows_for_split and B % 2 == 0 and (B // 2) % 8 == 0:
            return B // 2
        return B
    for cand in range(mxu_rows, 7, -8):       # largest sublane-aligned divisor
        if B % cand == 0:
            return cand
    return B                                  # fallback: single tile


def lstm_model_forward(x, params, *, num_layers, hidden_layer_size, output_size,
                       batch_tile=None, matmul_dtype=jnp.float32):
    """x: (B, T, I) float32, batch_first as in the PyTorch module."""
    B, T, I = x.shape
    H = hidden_layer_size
    O = output_size

    BT = _pick_batch_tile(B) if batch_tile is None else batch_tile
    assert B % BT == 0, "batch_tile must divide batch"
    assert BT == B or BT % 8 == 0, "batch tile must be sublane-aligned"
    nbt = B // BT

    # Host-side layout prep: time-major, then pre-flatten each batch tile to a
    # (T*BT, I) slab so the kernel never needs an in-kernel reshape.
    # (B,T,I) -> (T,B,I) -> (T,nbt,BT,I) -> (nbt,T,BT,I) -> (nbt, T*BT, I)
    # TODO(synk): at large B*T*I fold this relayout into the x BlockSpec /
    # per-T-chunk pregates inside the kernel so x is read from HBM once.
    x_tm = jnp.transpose(x.astype(matmul_dtype), (1, 0, 2))
    x_tiles = (x_tm.reshape(T, nbt, BT, I)
                   .transpose(1, 0, 2, 3)
                   .reshape(nbt, T * BT, I))

    # Layer-0 weights (transposed for row x col matmul) and combined biases.
    w_ih0T = params["w_ih"][0].T.astype(matmul_dtype)            # (I, 4H)
    w_hh0T = params["w_hh"][0].T.astype(matmul_dtype)            # (H, 4H)
    b0 = (params["b_ih"][0] + params["b_hh"][0]).reshape(1, 4 * H).astype(jnp.float32)

    # Final linear: (1, H) for the VPU-reduction O==1 path, else (H, O).
    if O == 1:
        w_lin_k = params["w_lin"].reshape(1, H).astype(jnp.float32)
    else:
        w_lin_k = params["w_lin"].T.astype(matmul_dtype)
    b_lin = params["b_lin"].reshape(1, O).astype(jnp.float32)

    def full_spec(shape):
        nd = len(shape)
        return pl.BlockSpec(shape, lambda j, _nd=nd: (0,) * _nd)

    args = [x_tiles, w_ih0T, w_hh0T, b0]
    in_specs = [pl.BlockSpec((None, T * BT, I), lambda j: (j, 0, 0)),
                full_spec((I, 4 * H)),
                full_spec((H, 4 * H)),
                full_spec((1, 4 * H))]
    scratch = []

    if num_layers > 1:
        w_ih_r = jnp.stack([params["w_ih"][l].T for l in range(1, num_layers)]
                           ).astype(matmul_dtype)                # (L-1, H, 4H)
        w_hh_r = jnp.stack([params["w_hh"][l].T for l in range(1, num_layers)]
                           ).astype(matmul_dtype)
        b_r = jnp.stack([(params["b_ih"][l] + params["b_hh"][l]).reshape(1, 4 * H)
                         for l in range(1, num_layers)]).astype(jnp.float32)
        args += [w_ih_r, w_hh_r, b_r]
        in_specs += [full_spec((num_layers - 1, H, 4 * H)),
                     full_spec((num_layers - 1, H, 4 * H)),
                     full_spec((num_layers - 1, 1, 4 * H))]
        scratch.append(pltpu.VMEM((T * BT, H), jnp.float32))     # seq_ref

    args += [w_lin_k, b_lin]
    in_specs += [full_spec(tuple(w_lin_k.shape)), full_spec((1, O))]
    scratch.append(pltpu.VMEM((T * BT, 4 * H), jnp.float32))     # pg_ref

    # VMEM sizing guard (v7x has 64 MiB physical / 32 MiB default scoped).
    est_bytes = (2 * x_tiles[0].size * x_tiles.dtype.itemsize        # x (2-buf)
                 + (T * BT * H + T * BT * 4 * H) * 4                 # scratch
                 + sum(int(a.size) * a.dtype.itemsize for a in args[1:])
                 + 2 * BT * O * 4)                                   # out (2-buf)
    vmem_limit = None
    if est_bytes > 30 * 2**20:
        vmem_limit = min(int(est_bytes * 1.25), 120 * 2**20)

    kernel = functools.partial(lstm_kernel,
                               num_layers=num_layers,
                               seq_len=T,
                               hidden=H,
                               batch_tile=BT,
                               out_features=O,
                               matmul_dtype=matmul_dtype)

    return pl.pallas_call(
        kernel,
        out_shape=jax.ShapeDtypeStruct((B, O), jnp.float32),
        grid=(nbt,),
        in_specs=in_specs,
        out_specs=pl.BlockSpec((BT, O), lambda j: (j, 0)),
        scratch_shapes=scratch,
        compiler_params=pltpu.CompilerParams(
            dimension_semantics=("parallel",),   # batch tiles are independent
            vmem_limit_bytes=vmem_limit),
    )(*args)


def lstm_model_reference(x, params, *, num_layers, hidden_layer_size, output_size):
    """Pure-JAX reference of the PyTorch forward, for a correctness check."""
    B, T, I = x.shape
    H = hidden_layer_size
    seq = x.astype(jnp.float32)
    for l in range(num_layers):
        w_ih, w_hh = params["w_ih"][l], params["w_hh"][l]
        b = params["b_ih"][l] + params["b_hh"][l]
        h = jnp.zeros((B, H), jnp.float32)
        c = jnp.zeros((B, H), jnp.float32)
        outs = []
        for t in range(T):
            gates = seq[:, t, :] @ w_ih.T + h @ w_hh.T + b
            i = jax.nn.sigmoid(gates[:, 0 * H:1 * H])
            f = jax.nn.sigmoid(gates[:, 1 * H:2 * H])
            g = jnp.tanh(gates[:, 2 * H:3 * H])
            o = jax.nn.sigmoid(gates[:, 3 * H:4 * H])
            c = f * c + i * g
            h = o * jnp.tanh(c)
            outs.append(h)
        seq = jnp.stack(outs, axis=1)
    return seq[:, -1, :] @ params["w_lin"].T + params["b_lin"]


def init_params(key, input_size, hidden_layer_size, num_layers, output_size):
    """Deterministic init mimicking PyTorch's uniform(-1/sqrt(H), 1/sqrt(H))."""
    H = hidden_layer_size
    k_lstm = 1.0 / jnp.sqrt(H)
    keys = jax.random.split(key, 4 * num_layers + 2)
    w_ih, w_hh, b_ih, b_hh = [], [], [], []
    for l in range(num_layers):
        in_dim = input_size if l == 0 else H
        w_ih.append(jax.random.uniform(keys[4 * l + 0], (4 * H, in_dim),
                                       minval=-k_lstm, maxval=k_lstm, dtype=jnp.float32))
        w_hh.append(jax.random.uniform(keys[4 * l + 1], (4 * H, H),
                                       minval=-k_lstm, maxval=k_lstm, dtype=jnp.float32))
        b_ih.append(jax.random.uniform(keys[4 * l + 2], (4 * H,),
                                       minval=-k_lstm, maxval=k_lstm, dtype=jnp.float32))
        b_hh.append(jax.random.uniform(keys[4 * l + 3], (4 * H,),
                                       minval=-k_lstm, maxval=k_lstm, dtype=jnp.float32))
    k_lin = 1.0 / jnp.sqrt(H)
    w_lin = jax.random.uniform(keys[-2], (output_size, H),
                               minval=-k_lin, maxval=k_lin, dtype=jnp.float32)
    b_lin = jax.random.uniform(keys[-1], (output_size,),
                               minval=-k_lin, maxval=k_lin, dtype=jnp.float32)
    return {"w_ih": w_ih, "w_hh": w_hh, "b_ih": b_ih, "b_hh": b_hh,
            "w_lin": w_lin, "b_lin": b_lin}


if __name__ == "__main__":
    # Small shapes consistent with the module's forward:
    # input_seq: (batch=8, seq=8, input_size=16); hidden=32; num_layers=2; output=1.
    B, T, I = 8, 8, 16
    H, L, O = 32, 2, 1

    key = jax.random.PRNGKey(0)
    k_x, k_p = jax.random.split(key)
    x = jax.random.normal(k_x, (B, T, I), dtype=jnp.float32)
    params = init_params(k_p, I, H, L, O)

    out = lstm_model_forward(x, params, num_layers=L,
                             hidden_layer_size=H, output_size=O)
    out = jax.block_until_ready(out)

    ref = lstm_model_reference(x, params, num_layers=L,
                               hidden_layer_size=H, output_size=O)
    assert out.shape == (B, O), out.shape
    assert jnp.allclose(out, ref, atol=1e-4, rtol=1e-4), \
        f"max err {jnp.max(jnp.abs(out - ref))}"

    print("KERNEL_OK")
</pallas_src>

<mosaic_0001>
module attributes {stable_mosaic.version = 11 : i64} {
  func.func @lstm_kernel(%arg0: i32, %arg1: memref<1x64x16xf32, #tpu.memory_space<vmem>>, %arg2: memref<16x128xf32, #tpu.memory_space<vmem>>, %arg3: memref<32x128xf32, #tpu.memory_space<vmem>>, %arg4: memref<1x128xf32, #tpu.memory_space<vmem>>, %arg5: memref<1x32x128xf32, #tpu.memory_space<vmem>>, %arg6: memref<1x32x128xf32, #tpu.memory_space<vmem>>, %arg7: memref<1x1x128xf32, #tpu.memory_space<vmem>>, %arg8: memref<1x32xf32, #tpu.memory_space<vmem>>, %arg9: memref<1x1xf32, #tpu.memory_space<vmem>>, %arg10: memref<8x1xf32, #tpu.memory_space<vmem>>, %arg11: memref<64x32xf32, #tpu.memory_space<vmem>>, %arg12: memref<64x128xf32, #tpu.memory_space<vmem>>) attributes {dimension_semantics = [#tpu.dimension_semantics<parallel>], iteration_bounds = array<i64: 1>, scalar_prefetch = 0 : i64, scratch_operands = 2 : i64, tpu.core_type = #tpu.core_type<tc>, window_params = [{transform_indices = @transform_0, window_bounds = array<i64: 1, 64, 16>}, {pipeline_mode = #tpu.pipeline_mode<synchronous>, transform_indices = @transform_1, window_bounds = array<i64: 16, 128>}, {pipeline_mode = #tpu.pipeline_mode<synchronous>, transform_indices = @transform_2, window_bounds = array<i64: 32, 128>}, {pipeline_mode = #tpu.pipeline_mode<synchronous>, transform_indices = @transform_3, window_bounds = array<i64: 1, 128>}, {pipeline_mode = #tpu.pipeline_mode<synchronous>, transform_indices = @transform_4, window_bounds = array<i64: 1, 32, 128>}, {pipeline_mode = #tpu.pipeline_mode<synchronous>, transform_indices = @transform_5, window_bounds = array<i64: 1, 32, 128>}, {pipeline_mode = #tpu.pipeline_mode<synchronous>, transform_indices = @transform_6, window_bounds = array<i64: 1, 1, 128>}, {pipeline_mode = #tpu.pipeline_mode<synchronous>, transform_indices = @transform_7, window_bounds = array<i64: 1, 32>}, {pipeline_mode = #tpu.pipeline_mode<synchronous>, transform_indices = @transform_8, window_bounds = array<i64: 1, 1>}, {transform_indices = @transform_9, window_bounds = array<i64: 8, 1>}]} {
    %0 = tpu.iota {dimensions = array<i32: 1>} : vector<8x128xi32>
    %c64_i32 = arith.constant 64 : i32
    %1 = vector.broadcast %c64_i32 : i32 to vector<8x128xi32>
    %2 = arith.cmpi sge, %0, %1 : vector<8x128xi32>
    %c96_i32 = arith.constant 96 : i32
    %3 = vector.broadcast %c96_i32 : i32 to vector<8x128xi32>
    %4 = arith.cmpi slt, %0, %3 : vector<8x128xi32>
    %5 = arith.andi %2, %4 : vector<8x128xi1>
    %cst = arith.constant 1.000000e+00 : f32
    %cst_0 = arith.constant 5.000000e-01 : f32
    %6 = vector.broadcast %cst : f32 to vector<8x128xf32>
    %7 = vector.broadcast %cst_0 : f32 to vector<8x128xf32>
    %8 = arith.select %5, %6, %7 : vector<8x128xi1>, vector<8x128xf32>
    %cst_1 = arith.constant 0.000000e+00 : f32
    %cst_2 = arith.constant 5.000000e-01 : f32
    %9 = vector.broadcast %cst_1 : f32 to vector<8x128xf32>
    %10 = vector.broadcast %cst_2 : f32 to vector<8x128xf32>
    %11 = arith.select %5, %9, %10 : vector<8x128xi1>, vector<8x128xf32>
    %c0 = arith.constant 0 : index
    %c0_3 = arith.constant 0 : index
    %c0_4 = arith.constant 0 : index
    %12 = vector.load %arg1[%c0, %c0_3, %c0_4] : memref<1x64x16xf32, #tpu.memory_space<vmem>>, vector<1x64x16xf32>
    %13 = vector.shape_cast %12 : vector<1x64x16xf32> to vector<64x16xf32>
    %c0_5 = arith.constant 0 : index
    %c0_6 = arith.constant 0 : index
    %14 = vector.load %arg2[%c0_5, %c0_6] : memref<16x128xf32, #tpu.memory_space<vmem>>, vector<16x128xf32>
    %c0_7 = arith.constant 0 : index
    %c0_8 = arith.constant 0 : index
    %15 = vector.load %arg3[%c0_7, %c0_8] : memref<32x128xf32, #tpu.memory_space<vmem>>, vector<32x128xf32>
    %c0_9 = arith.constant 0 : index
    %c0_10 = arith.constant 0 : index
    %16 = vector.load %arg4[%c0_9, %c0_10] : memref<1x128xf32, #tpu.memory_space<vmem>>, vector<1x128xf32>
    %cst_11 = arith.constant dense<0.000000e+00> : vector<64x128xf32>
    %17 = tpu.matmul %13, %14, %cst_11 {dimension_numbers = #tpu.dot_dimension_numbers<[1], [0], [0], [1], [0, 0, 1, 1], [], []>} : vector<64x16xf32>, vector<16x128xf32>, vector<64x128xf32> -> vector<64x128xf32>
    %18 = vector.broadcast %16 : vector<1x128xf32> to vector<64x128xf32>
    %19 = arith.addf %17, %18 : vector<64x128xf32>
    %c0_12 = arith.constant 0 : index
    %c0_13 = arith.constant 0 : index
    %20 = vector.load %arg12[%c0_12, %c0_13] : memref<64x128xf32, #tpu.memory_space<vmem>>, vector<64x128xf32>
    tpu.vector_store %arg12[%c0_12, %c0_13], %19 {strides = array<i32>} : memref<64x128xf32, #tpu.memory_space<vmem>>, vector<64x128xf32>,
    %cst_14 = arith.constant 0.000000e+00 : f32
    %21 = vector.broadcast %cst_14 : f32 to vector<8x32xf32>
    %cst_15 = arith.constant 0.000000e+00 : f32
    %22 = vector.broadcast %cst_15 : f32 to vector<8x32xf32>
    %c0_16 = arith.constant 0 : index
    %c0_17 = arith.constant 0 : index
    %23 = vector.load %arg12[%c0_16, %c0_17] : memref<64x128xf32, #tpu.memory_space<vmem>>, vector<8x128xf32>
    %cst_18 = arith.constant dense<0.000000e+00> : vector<8x128xf32>
    %24 = tpu.matmul %21, %15, %cst_18 {dimension_numbers = #tpu.dot_dimension_numbers<[1], [0], [0], [1], [0, 0, 1, 1], [], []>} : vector<8x32xf32>, vector<32x128xf32>, vector<8x128xf32> -> vector<8x128xf32>
    %25 = arith.addf %23, %24 : vector<8x128xf32>
    %26 = arith.mulf %25, %8 : vector<8x128xf32>
    %27 = math.tanh %26 : vector<8x128xf32>
    %28 = arith.mulf %27, %8 : vector<8x128xf32>
    %29 = arith.addf %28, %11 : vector<8x128xf32>
    %30 = vector.extract_strided_slice %29 {offsets = [0, 0], sizes = [8, 32], strides = [1, 1]} : vector<8x128xf32> to vector<8x32xf32>
    %31 = vector.extract_strided_slice %29 {offsets = [0, 32], sizes = [8, 32], strides = [1, 1]} : vector<8x128xf32> to vector<8x32xf32>
    %32 = vector.extract_strided_slice %29 {offsets = [0, 64], sizes = [8, 32], strides = [1, 1]} : vector<8x128xf32> to vector<8x32xf32>
    %33 = vector.extract_strided_slice %29 {offsets = [0, 96], sizes = [8, 32], strides = [1, 1]} : vector<8x128xf32> to vector<8x32xf32>
    %34 = arith.mulf %31, %22 : vector<8x32xf32>
    %35 = arith.mulf %30, %32 : vector<8x32xf32>
    %36 = arith.addf %34, %35 : vector<8x32xf32>
    %37 = math.tanh %36 : vector<8x32xf32>
    %38 = arith.mulf %33, %37 : vector<8x32xf32>
    %c0_19 = arith.constant 0 : index
    %c0_20 = arith.constant 0 : index
    %39 = vector.load %arg11[%c0_19, %c0_20] : memref<64x32xf32, #tpu.memory_space<vmem>>, vector<8x32xf32>
    tpu.vector_store %arg11[%c0_19, %c0_20], %38 {strides = array<i32>} : memref<64x32xf32, #tpu.memory_space<vmem>>, vector<8x32xf32>,
    %c8 = arith.constant 8 : index
    %c0_21 = arith.constant 0 : index
    %40 = vector.load %arg12[%c8, %c0_21] : memref<64x128xf32, #tpu.memory_space<vmem>>, vector<8x128xf32>
    %cst_22 = arith.constant dense<0.000000e+00> : vector<8x128xf32>
    %41 = tpu.matmul %38, %15, %cst_22 {dimension_numbers = #tpu.dot_dimension_numbers<[1], [0], [0], [1], [0, 0, 1, 1], [], []>} : vector<8x32xf32>, vector<32x128xf32>, vector<8x128xf32> -> vector<8x128xf32>
    %42 = arith.addf %40, %41 : vector<8x128xf32>
    %43 = arith.mulf %42, %8 : vector<8x128xf32>
    %44 = math.tanh %43 : vector<8x128xf32>
    %45 = arith.mulf %44, %8 : vector<8x128xf32>
    %46 = arith.addf %45, %11 : vector<8x128xf32>
    %47 = vector.extract_strided_slice %46 {offsets = [0, 0], sizes = [8, 32], strides = [1, 1]} : vector<8x128xf32> to vector<8x32xf32>
    %48 = vector.extract_strided_slice %46 {offsets = [0, 32], sizes = [8, 32], strides = [1, 1]} : vector<8x128xf32> to vector<8x32xf32>
    %49 = vector.extract_strided_slice %46 {offsets = [0, 64], sizes = [8, 32], strides = [1, 1]} : vector<8x128xf32> to vector<8x32xf32>
    %50 = vector.extract_strided_slice %46 {offsets = [0, 96], sizes = [8, 32], strides = [1, 1]} : vector<8x128xf32> to vector<8x32xf32>
    %51 = arith.mulf %48, %36 : vector<8x32xf32>
    %52 = arith.mulf %47, %49 : vector<8x32xf32>
    %53 = arith.addf %51, %52 : vector<8x32xf32>
    %54 = math.tanh %53 : vector<8x32xf32>
    %55 = arith.mulf %50, %54 : vector<8x32xf32>
    %c8_23 = arith.constant 8 : index
    %c0_24 = arith.constant 0 : index
    %56 = vector.load %arg11[%c8_23, %c0_24] : memref<64x32xf32, #tpu.memory_space<vmem>>, vector<8x32xf32>
    tpu.vector_store %arg11[%c8_23, %c0_24], %55 {strides = array<i32>} : memref<64x32xf32, #tpu.memory_space<vmem>>, vector<8x32xf32>,
    %c16 = arith.constant 16 : index
    %c0_25 = arith.constant 0 : index
    %57 = vector.load %arg12[%c16, %c0_25] : memref<64x128xf32, #tpu.memory_space<vmem>>, vector<8x128xf32>
    %cst_26 = arith.constant dense<0.000000e+00> : vector<8x128xf32>
    %58 = tpu.matmul %55, %15, %cst_26 {dimension_numbers = #tpu.dot_dimension_numbers<[1], [0], [0], [1], [0, 0, 1, 1], [], []>} : vector<8x32xf32>, vector<32x128xf32>, vector<8x128xf32> -> vector<8x128xf32>
    %59 = arith.addf %57, %58 : vector<8x128xf32>
    %60 = arith.mulf %59, %8 : vector<8x128xf32>
    %61 = math.tanh %60 : vector<8x128xf32>
    %62 = arith.mulf %61, %8 : vector<8x128xf32>
    %63 = arith.addf %62, %11 : vector<8x128xf32>
    %64 = vector.extract_strided_slice %63 {offsets = [0, 0], sizes = [8, 32], strides = [1, 1]} : vector<8x128xf32> to vector<8x32xf32>
    %65 = vector.extract_strided_slice %63 {offsets = [0, 32], sizes = [8, 32], strides = [1, 1]} : vector<8x128xf32> to vector<8x32xf32>
    %66 = vector.extract_strided_slice %63 {offsets = [0, 64], sizes = [8, 32], strides = [1, 1]} : vector<8x128xf32> to vector<8x32xf32>
    %67 = vector.extract_strided_slice %63 {offsets = [0, 96], sizes = [8, 32], strides = [1, 1]} : vector<8x128xf32> to vector<8x32xf32>
    %68 = arith.mulf %65, %53 : vector<8x32xf32>
    %69 = arith.mulf %64, %66 : vector<8x32xf32>
    %70 = arith.addf %68, %69 : vector<8x32xf32>
    %71 = math.tanh %70 : vector<8x32xf32>
    %72 = arith.mulf %67, %71 : vector<8x32xf32>
    %c16_27 = arith.constant 16 : index
    %c0_28 = arith.constant 0 : index
    %73 = vector.load %arg11[%c16_27, %c0_28] : memref<64x32xf32, #tpu.memory_space<vmem>>, vector<8x32xf32>
    tpu.vector_store %arg11[%c16_27, %c0_28], %72 {strides = array<i32>} : memref<64x32xf32, #tpu.memory_space<vmem>>, vector<8x32xf32>,
    %c24 = arith.constant 24 : index
    %c0_29 = arith.constant 0 : index
    %74 = vector.load %arg12[%c24, %c0_29] : memref<64x128xf32, #tpu.memory_space<vmem>>, vector<8x128xf32>
    %cst_30 = arith.constant dense<0.000000e+00> : vector<8x128xf32>
    %75 = tpu.matmul %72, %15, %cst_30 {dimension_numbers = #tpu.dot_dimension_numbers<[1], [0], [0], [1], [0, 0, 1, 1], [], []>} : vector<8x32xf32>, vector<32x128xf32>, vector<8x128xf32> -> vector<8x128xf32>
    %76 = arith.addf %74, %75 : vector<8x128xf32>
    %77 = arith.mulf %76, %8 : vector<8x128xf32>
    %78 = math.tanh %77 : vector<8x128xf32>
    %79 = arith.mulf %78, %8 : vector<8x128xf32>
    %80 = arith.addf %79, %11 : vector<8x128xf32>
    %81 = vector.extract_strided_slice %80 {offsets = [0, 0], sizes = [8, 32], strides = [1, 1]} : vector<8x128xf32> to vector<8x32xf32>
    %82 = vector.extract_strided_slice %80 {offsets = [0, 32], sizes = [8, 32], strides = [1, 1]} : vector<8x128xf32> to vector<8x32xf32>
    %83 = vector.extract_strided_slice %80 {offsets = [0, 64], sizes = [8, 32], strides = [1, 1]} : vector<8x128xf32> to vector<8x32xf32>
    %84 = vector.extract_strided_slice %80 {offsets = [0, 96], sizes = [8, 32], strides = [1, 1]} : vector<8x128xf32> to vector<8x32xf32>
    %85 = arith.mulf %82, %70 : vector<8x32xf32>
    %86 = arith.mulf %81, %83 : vector<8x32xf32>
    %87 = arith.addf %85, %86 : vector<8x32xf32>
    %88 = math.tanh %87 : vector<8x32xf32>
    %89 = arith.mulf %84, %88 : vector<8x32xf32>
    %c24_31 = arith.constant 24 : index
    %c0_32 = arith.constant 0 : index
    %90 = vector.load %arg11[%c24_31, %c0_32] : memref<64x32xf32, #tpu.memory_space<vmem>>, vector<8x32xf32>
    tpu.vector_store %arg11[%c24_31, %c0_32], %89 {strides = array<i32>} : memref<64x32xf32, #tpu.memory_space<vmem>>, vector<8x32xf32>,
    %c32 = arith.constant 32 : index
    %c0_33 = arith.constant 0 : index
    %91 = vector.load %arg12[%c32, %c0_33] : memref<64x128xf32, #tpu.memory_space<vmem>>, vector<8x128xf32>
    %cst_34 = arith.constant dense<0.000000e+00> : vector<8x128xf32>
    %92 = tpu.matmul %89, %15, %cst_34 {dimension_numbers = #tpu.dot_dimension_numbers<[1], [0], [0], [1], [0, 0, 1, 1], [], []>} : vector<8x32xf32>, vector<32x128xf32>, vector<8x128xf32> -> vector<8x128xf32>
    %93 = arith.addf %91, %92 : vector<8x128xf32>
    %94 = arith.mulf %93, %8 : vector<8x128xf32>
    %95 = math.tanh %94 : vector<8x128xf32>
    %96 = arith.mulf %95, %8 : vector<8x128xf32>
    %97 = arith.addf %96, %11 : vector<8x128xf32>
    %98 = vector.extract_strided_slice %97 {offsets = [0, 0], sizes = [8, 32], strides = [1, 1]} : vector<8x128xf32> to vector<8x32xf32>
    %99 = vector.extract_strided_slice %97 {offsets = [0, 32], sizes = [8, 32], strides = [1, 1]} : vector<8x128xf32> to vector<8x32xf32>
    %100 = vector.extract_strided_slice %97 {offsets = [0, 64], sizes = [8, 32], strides = [1, 1]} : vector<8x128xf32> to vector<8x32xf32>
    %101 = vector.extract_strided_slice %97 {offsets = [0, 96], sizes = [8, 32], strides = [1, 1]} : vector<8x128xf32> to vector<8x32xf32>
    %102 = arith.mulf %99, %87 : vector<8x32xf32>
    %103 = arith.mulf %98, %100 : vector<8x32xf32>
    %104 = arith.addf %102, %103 : vector<8x32xf32>
    %105 = math.tanh %104 : vector<8x32xf32>
    %106 = arith.mulf %101, %105 : vector<8x32xf32>
    %c32_35 = arith.constant 32 : index
    %c0_36 = arith.constant 0 : index
    %107 = vector.load %arg11[%c32_35, %c0_36] : memref<64x32xf32, #tpu.memory_space<vmem>>, vector<8x32xf32>
    tpu.vector_store %arg11[%c32_35, %c0_36], %106 {strides = array<i32>} : memref<64x32xf32, #tpu.memory_space<vmem>>, vector<8x32xf32>,
    %c40 = arith.constant 40 : index
    %c0_37 = arith.constant 0 : index
    %108 = vector.load %arg12[%c40, %c0_37] : memref<64x128xf32, #tpu.memory_space<vmem>>, vector<8x128xf32>
    %cst_38 = arith.constant dense<0.000000e+00> : vector<8x128xf32>
    %109 = tpu.matmul %106, %15, %cst_38 {dimension_numbers = #tpu.dot_dimension_numbers<[1], [0], [0], [1], [0, 0, 1, 1], [], []>} : vector<8x32xf32>, vector<32x128xf32>, vector<8x128xf32> -> vector<8x128xf32>
    %110 = arith.addf %108, %109 : vector<8x128xf32>
    %111 = arith.mulf %110, %8 : vector<8x128xf32>
    %112 = math.tanh %111 : vector<8x128xf32>
    %113 = arith.mulf %112, %8 : vector<8x128xf32>
    %114 = arith.addf %113, %11 : vector<8x128xf32>
    %115 = vector.extract_strided_slice %114 {offsets = [0, 0], sizes = [8, 32], strides = [1, 1]} : vector<8x128xf32> to vector<8x32xf32>
    %116 = vector.extract_strided_slice %114 {offsets = [0, 32], sizes = [8, 32], strides = [1, 1]} : vector<8x128xf32> to vector<8x32xf32>
    %117 = vector.extract_strided_slice %114 {offsets = [0, 64], sizes = [8, 32], strides = [1, 1]} : vector<8x128xf32> to vector<8x32xf32>
    %118 = vector.extract_strided_slice %114 {offsets = [0, 96], sizes = [8, 32], strides = [1, 1]} : vector<8x128xf32> to vector<8x32xf32>
    %119 = arith.mulf %116, %104 : vector<8x32xf32>
    %120 = arith.mulf %115, %117 : vector<8x32xf32>
    %121 = arith.addf %119, %120 : vector<8x32xf32>
    %122 = math.tanh %121 : vector<8x32xf32>
    %123 = arith.mulf %118, %122 : vector<8x32xf32>
    %c40_39 = arith.constant 40 : index
    %c0_40 = arith.constant 0 : index
    %124 = vector.load %arg11[%c40_39, %c0_40] : memref<64x32xf32, #tpu.memory_space<vmem>>, vector<8x32xf32>
    tpu.vector_store %arg11[%c40_39, %c0_40], %123 {strides = array<i32>} : memref<64x32xf32, #tpu.memory_space<vmem>>, vector<8x32xf32>,
    %c48 = arith.constant 48 : index
    %c0_41 = arith.constant 0 : index
    %125 = vector.load %arg12[%c48, %c0_41] : memref<64x128xf32, #tpu.memory_space<vmem>>, vector<8x128xf32>
    %cst_42 = arith.constant dense<0.000000e+00> : vector<8x128xf32>
    %126 = tpu.matmul %123, %15, %cst_42 {dimension_numbers = #tpu.dot_dimension_numbers<[1], [0], [0], [1], [0, 0, 1, 1], [], []>} : vector<8x32xf32>, vector<32x128xf32>, vector<8x128xf32> -> vector<8x128xf32>
    %127 = arith.addf %125, %126 : vector<8x128xf32>
    %128 = arith.mulf %127, %8 : vector<8x128xf32>
    %129 = math.tanh %128 : vector<8x128xf32>
    %130 = arith.mulf %129, %8 : vector<8x128xf32>
    %131 = arith.addf %130, %11 : vector<8x128xf32>
    %132 = vector.extract_strided_slice %131 {offsets = [0, 0], sizes = [8, 32], strides = [1, 1]} : vector<8x128xf32> to vector<8x32xf32>
    %133 = vector.extract_strided_slice %131 {offsets = [0, 32], sizes = [8, 32], strides = [1, 1]} : vector<8x128xf32> to vector<8x32xf32>
    %134 = vector.extract_strided_slice %131 {offsets = [0, 64], sizes = [8, 32], strides = [1, 1]} : vector<8x128xf32> to vector<8x32xf32>
    %135 = vector.extract_strided_slice %131 {offsets = [0, 96], sizes = [8, 32], strides = [1, 1]} : vector<8x128xf32> to vector<8x32xf32>
    %136 = arith.mulf %133, %121 : vector<8x32xf32>
    %137 = arith.mulf %132, %134 : vector<8x32xf32>
    %138 = arith.addf %136, %137 : vector<8x32xf32>
    %139 = math.tanh %138 : vector<8x32xf32>
    %140 = arith.mulf %135, %139 : vector<8x32xf32>
    %c48_43 = arith.constant 48 : index
    %c0_44 = arith.constant 0 : index
    %141 = vector.load %arg11[%c48_43, %c0_44] : memref<64x32xf32, #tpu.memory_space<vmem>>, vector<8x32xf32>
    tpu.vector_store %arg11[%c48_43, %c0_44], %140 {strides = array<i32>} : memref<64x32xf32, #tpu.memory_space<vmem>>, vector<8x32xf32>,
    %c56 = arith.constant 56 : index
    %c0_45 = arith.constant 0 : index
    %142 = vector.load %arg12[%c56, %c0_45] : memref<64x128xf32, #tpu.memory_space<vmem>>, vector<8x128xf32>
    %cst_46 = arith.constant dense<0.000000e+00> : vector<8x128xf32>
    %143 = tpu.matmul %140, %15, %cst_46 {dimension_numbers = #tpu.dot_dimension_numbers<[1], [0], [0], [1], [0, 0, 1, 1], [], []>} : vector<8x32xf32>, vector<32x128xf32>, vector<8x128xf32> -> vector<8x128xf32>
    %144 = arith.addf %142, %143 : vector<8x128xf32>
    %145 = arith.mulf %144, %8 : vector<8x128xf32>
    %146 = math.tanh %145 : vector<8x128xf32>
    %147 = arith.mulf %146, %8 : vector<8x128xf32>
    %148 = arith.addf %147, %11 : vector<8x128xf32>
    %149 = vector.extract_strided_slice %148 {offsets = [0, 0], sizes = [8, 32], strides = [1, 1]} : vector<8x128xf32> to vector<8x32xf32>
    %150 = vector.extract_strided_slice %148 {offsets = [0, 32], sizes = [8, 32], strides = [1, 1]} : vector<8x128xf32> to vector<8x32xf32>
    %151 = vector.extract_strided_slice %148 {offsets = [0, 64], sizes = [8, 32], strides = [1, 1]} : vector<8x128xf32> to vector<8x32xf32>
    %152 = vector.extract_strided_slice %148 {offsets = [0, 96], sizes = [8, 32], strides = [1, 1]} : vector<8x128xf32> to vector<8x32xf32>
    %153 = arith.mulf %150, %138 : vector<8x32xf32>
    %154 = arith.mulf %149, %151 : vector<8x32xf32>
    %155 = arith.addf %153, %154 : vector<8x32xf32>
    %156 = math.tanh %155 : vector<8x32xf32>
    %157 = arith.mulf %152, %156 : vector<8x32xf32>
    %c56_47 = arith.constant 56 : index
    %c0_48 = arith.constant 0 : index
    %158 = vector.load %arg11[%c56_47, %c0_48] : memref<64x32xf32, #tpu.memory_space<vmem>>, vector<8x32xf32>
    tpu.vector_store %arg11[%c56_47, %c0_48], %157 {strides = array<i32>} : memref<64x32xf32, #tpu.memory_space<vmem>>, vector<8x32xf32>,
    %c0_49 = arith.constant 0 : index
    %c0_50 = arith.constant 0 : index
    %159 = vector.load %arg11[%c0_49, %c0_50] : memref<64x32xf32, #tpu.memory_space<vmem>>, vector<64x32xf32>
    %c0_51 = arith.constant 0 : index
    %c0_52 = arith.constant 0 : index
    %c0_53 = arith.constant 0 : index
    %160 = vector.load %arg5[%c0_51, %c0_52, %c0_53] : memref<1x32x128xf32, #tpu.memory_space<vmem>>, vector<1x32x128xf32>
    %161 = vector.shape_cast %160 : vector<1x32x128xf32> to vector<32x128xf32>
    %c0_54 = arith.constant 0 : index
    %c0_55 = arith.constant 0 : index
    %c0_56 = arith.constant 0 : index
    %162 = vector.load %arg6[%c0_54, %c0_55, %c0_56] : memref<1x32x128xf32, #tpu.memory_space<vmem>>, vector<1x32x128xf32>
    %163 = vector.shape_cast %162 : vector<1x32x128xf32> to vector<32x128xf32>
    %c0_57 = arith.constant 0 : index
    %c0_58 = arith.constant 0 : index
    %c0_59 = arith.constant 0 : index
    %164 = vector.load %arg7[%c0_57, %c0_58, %c0_59] : memref<1x1x128xf32, #tpu.memory_space<vmem>>, vector<1x1x128xf32>
    %165 = vector.shape_cast %164 : vector<1x1x128xf32> to vector<1x128xf32>
    %cst_60 = arith.constant dense<0.000000e+00> : vector<64x128xf32>
    %166 = tpu.matmul %159, %161, %cst_60 {dimension_numbers = #tpu.dot_dimension_numbers<[1], [0], [0], [1], [0, 0, 1, 1], [], []>} : vector<64x32xf32>, vector<32x128xf32>, vector<64x128xf32> -> vector<64x128xf32>
    %167 = vector.broadcast %165 : vector<1x128xf32> to vector<64x128xf32>
    %168 = arith.addf %166, %167 : vector<64x128xf32>
    %c0_61 = arith.constant 0 : index
    %c0_62 = arith.constant 0 : index
    %169 = vector.load %arg12[%c0_61, %c0_62] : memref<64x128xf32, #tpu.memory_space<vmem>>, vector<64x128xf32>
    tpu.vector_store %arg12[%c0_61, %c0_62], %168 {strides = array<i32>} : memref<64x128xf32, #tpu.memory_space<vmem>>, vector<64x128xf32>,
    %cst_63 = arith.constant 0.000000e+00 : f32
    %170 = vector.broadcast %cst_63 : f32 to vector<8x32xf32>
    %cst_64 = arith.constant 0.000000e+00 : f32
    %171 = vector.broadcast %cst_64 : f32 to vector<8x32xf32>
    %c0_65 = arith.constant 0 : index
    %c0_66 = arith.constant 0 : index
    %172 = vector.load %arg12[%c0_65, %c0_66] : memref<64x128xf32, #tpu.memory_space<vmem>>, vector<8x128xf32>
    %cst_67 = arith.constant dense<0.000000e+00> : vector<8x128xf32>
    %173 = tpu.matmul %170, %163, %cst_67 {dimension_numbers = #tpu.dot_dimension_numbers<[1], [0], [0], [1], [0, 0, 1, 1], [], []>} : vector<8x32xf32>, vector<32x128xf32>, vector<8x128xf32> -> vector<8x128xf32>
    %174 = arith.addf %172, %173 : vector<8x128xf32>
    %175 = arith.mulf %174, %8 : vector<8x128xf32>
    %176 = math.tanh %175 : vector<8x128xf32>
    %177 = arith.mulf %176, %8 : vector<8x128xf32>
    %178 = arith.addf %177, %11 : vector<8x128xf32>
    %179 = vector.extract_strided_slice %178 {offsets = [0, 0], sizes = [8, 32], strides = [1, 1]} : vector<8x128xf32> to vector<8x32xf32>
    %180 = vector.extract_strided_slice %178 {offsets = [0, 32], sizes = [8, 32], strides = [1, 1]} : vector<8x128xf32> to vector<8x32xf32>
    %181 = vector.extract_strided_slice %178 {offsets = [0, 64], sizes = [8, 32], strides = [1, 1]} : vector<8x128xf32> to vector<8x32xf32>
    %182 = vector.extract_strided_slice %178 {offsets = [0, 96], sizes = [8, 32], strides = [1, 1]} : vector<8x128xf32> to vector<8x32xf32>
    %183 = arith.mulf %180, %171 : vector<8x32xf32>
    %184 = arith.mulf %179, %181 : vector<8x32xf32>
    %185 = arith.addf %183, %184 : vector<8x32xf32>
    %186 = math.tanh %185 : vector<8x32xf32>
    %187 = arith.mulf %182, %186 : vector<8x32xf32>
    %c8_68 = arith.constant 8 : index
    %c0_69 = arith.constant 0 : index
    %188 = vector.load %arg12[%c8_68, %c0_69] : memref<64x128xf32, #tpu.memory_space<vmem>>, vector<8x128xf32>
    %cst_70 = arith.constant dense<0.000000e+00> : vector<8x128xf32>
    %189 = tpu.matmul %187, %163, %cst_70 {dimension_numbers = #tpu.dot_dimension_numbers<[1], [0], [0], [1], [0, 0, 1, 1], [], []>} : vector<8x32xf32>, vector<32x128xf32>, vector<8x128xf32> -> vector<8x128xf32>
    %190 = arith.addf %188, %189 : vector<8x128xf32>
    %191 = arith.mulf %190, %8 : vector<8x128xf32>
    %192 = math.tanh %191 : vector<8x128xf32>
    %193 = arith.mulf %192, %8 : vector<8x128xf32>
    %194 = arith.addf %193, %11 : vector<8x128xf32>
    %195 = vector.extract_strided_slice %194 {offsets = [0, 0], sizes = [8, 32], strides = [1, 1]} : vector<8x128xf32> to vector<8x32xf32>
    %196 = vector.extract_strided_slice %194 {offsets = [0, 32], sizes = [8, 32], strides = [1, 1]} : vector<8x128xf32> to vector<8x32xf32>
    %197 = vector.extract_strided_slice %194 {offsets = [0, 64], sizes = [8, 32], strides = [1, 1]} : vector<8x128xf32> to vector<8x32xf32>
    %198 = vector.extract_strided_slice %194 {offsets = [0, 96], sizes = [8, 32], strides = [1, 1]} : vector<8x128xf32> to vector<8x32xf32>
    %199 = arith.mulf %196, %185 : vector<8x32xf32>
    %200 = arith.mulf %195, %197 : vector<8x32xf32>
    %201 = arith.addf %199, %200 : vector<8x32xf32>
    %202 = math.tanh %201 : vector<8x32xf32>
    %203 = arith.mulf %198, %202 : vector<8x32xf32>
    %c16_71 = arith.constant 16 : index
    %c0_72 = arith.constant 0 : index
    %204 = vector.load %arg12[%c16_71, %c0_72] : memref<64x128xf32, #tpu.memory_space<vmem>>, vector<8x128xf32>
    %cst_73 = arith.constant dense<0.000000e+00> : vector<8x128xf32>
    %205 = tpu.matmul %203, %163, %cst_73 {dimension_numbers = #tpu.dot_dimension_numbers<[1], [0], [0], [1], [0, 0, 1, 1], [], []>} : vector<8x32xf32>, vector<32x128xf32>, vector<8x128xf32> -> vector<8x128xf32>
    %206 = arith.addf %204, %205 : vector<8x128xf32>
    %207 = arith.mulf %206, %8 : vector<8x128xf32>
    %208 = math.tanh %207 : vector<8x128xf32>
    %209 = arith.mulf %208, %8 : vector<8x128xf32>
    %210 = arith.addf %209, %11 : vector<8x128xf32>
    %211 = vector.extract_strided_slice %210 {offsets = [0, 0], sizes = [8, 32], strides = [1, 1]} : vector<8x128xf32> to vector<8x32xf32>
    %212 = vector.extract_strided_slice %210 {offsets = [0, 32], sizes = [8, 32], strides = [1, 1]} : vector<8x128xf32> to vector<8x32xf32>
    %213 = vector.extract_strided_slice %210 {offsets = [0, 64], sizes = [8, 32], strides = [1, 1]} : vector<8x128xf32> to vector<8x32xf32>
    %214 = vector.extract_strided_slice %210 {offsets = [0, 96], sizes = [8, 32], strides = [1, 1]} : vector<8x128xf32> to vector<8x32xf32>
    %215 = arith.mulf %212, %201 : vector<8x32xf32>
    %216 = arith.mulf %211, %213 : vector<8x32xf32>
    %217 = arith.addf %215, %216 : vector<8x32xf32>
    %218 = math.tanh %217 : vector<8x32xf32>
    %219 = arith.mulf %214, %218 : vector<8x32xf32>
    %c24_74 = arith.constant 24 : index
    %c0_75 = arith.constant 0 : index
    %220 = vector.load %arg12[%c24_74, %c0_75] : memref<64x128xf32, #tpu.memory_space<vmem>>, vector<8x128xf32>
    %cst_76 = arith.constant dense<0.000000e+00> : vector<8x128xf32>
    %221 = tpu.matmul %219, %163, %cst_76 {dimension_numbers = #tpu.dot_dimension_numbers<[1], [0], [0], [1], [0, 0, 1, 1], [], []>} : vector<8x32xf32>, vector<32x128xf32>, vector<8x128xf32> -> vector<8x128xf32>
    %222 = arith.addf %220, %221 : vector<8x128xf32>
    %223 = arith.mulf %222, %8 : vector<8x128xf32>
    %224 = math.tanh %223 : vector<8x128xf32>
    %225 = arith.mulf %224, %8 : vector<8x128xf32>
    %226 = arith.addf %225, %11 : vector<8x128xf32>
    %227 = vector.extract_strided_slice %226 {offsets = [0, 0], sizes = [8, 32], strides = [1, 1]} : vector<8x128xf32> to vector<8x32xf32>
    %228 = vector.extract_strided_slice %226 {offsets = [0, 32], sizes = [8, 32], strides = [1, 1]} : vector<8x128xf32> to vector<8x32xf32>
    %229 = vector.extract_strided_slice %226 {offsets = [0, 64], sizes = [8, 32], strides = [1, 1]} : vector<8x128xf32> to vector<8x32xf32>
    %230 = vector.extract_strided_slice %226 {offsets = [0, 96], sizes = [8, 32], strides = [1, 1]} : vector<8x128xf32> to vector<8x32xf32>
    %231 = arith.mulf %228, %217 : vector<8x32xf32>
    %232 = arith.mulf %227, %229 : vector<8x32xf32>
    %233 = arith.addf %231, %232 : vector<8x32xf32>
    %234 = math.tanh %233 : vector<8x32xf32>
    %235 = arith.mulf %230, %234 : vector<8x32xf32>
    %c32_77 = arith.constant 32 : index
    %c0_78 = arith.constant 0 : index
    %236 = vector.load %arg12[%c32_77, %c0_78] : memref<64x128xf32, #tpu.memory_space<vmem>>, vector<8x128xf32>
    %cst_79 = arith.constant dense<0.000000e+00> : vector<8x128xf32>
    %237 = tpu.matmul %235, %163, %cst_79 {dimension_numbers = #tpu.dot_dimension_numbers<[1], [0], [0], [1], [0, 0, 1, 1], [], []>} : vector<8x32xf32>, vector<32x128xf32>, vector<8x128xf32> -> vector<8x128xf32>
    %238 = arith.addf %236, %237 : vector<8x128xf32>
    %239 = arith.mulf %238, %8 : vector<8x128xf32>
    %240 = math.tanh %239 : vector<8x128xf32>
    %241 = arith.mulf %240, %8 : vector<8x128xf32>
    %242 = arith.addf %241, %11 : vector<8x128xf32>
    %243 = vector.extract_strided_slice %242 {offsets = [0, 0], sizes = [8, 32], strides = [1, 1]} : vector<8x128xf32> to vector<8x32xf32>
    %244 = vector.extract_strided_slice %242 {offsets = [0, 32], sizes = [8, 32], strides = [1, 1]} : vector<8x128xf32> to vector<8x32xf32>
    %245 = vector.extract_strided_slice %242 {offsets = [0, 64], sizes = [8, 32], strides = [1, 1]} : vector<8x128xf32> to vector<8x32xf32>
    %246 = vector.extract_strided_slice %242 {offsets = [0, 96], sizes = [8, 32], strides = [1, 1]} : vector<8x128xf32> to vector<8x32xf32>
    %247 = arith.mulf %244, %233 : vector<8x32xf32>
    %248 = arith.mulf %243, %245 : vector<8x32xf32>
    %249 = arith.addf %247, %248 : vector<8x32xf32>
    %250 = math.tanh %249 : vector<8x32xf32>
    %251 = arith.mulf %246, %250 : vector<8x32xf32>
    %c40_80 = arith.constant 40 : index
    %c0_81 = arith.constant 0 : index
    %252 = vector.load %arg12[%c40_80, %c0_81] : memref<64x128xf32, #tpu.memory_space<vmem>>, vector<8x128xf32>
    %cst_82 = arith.constant dense<0.000000e+00> : vector<8x128xf32>
    %253 = tpu.matmul %251, %163, %cst_82 {dimension_numbers = #tpu.dot_dimension_numbers<[1], [0], [0], [1], [0, 0, 1, 1], [], []>} : vector<8x32xf32>, vector<32x128xf32>, vector<8x128xf32> -> vector<8x128xf32>
    %254 = arith.addf %252, %253 : vector<8x128xf32>
    %255 = arith.mulf %254, %8 : vector<8x128xf32>
    %256 = math.tanh %255 : vector<8x128xf32>
    %257 = arith.mulf %256, %8 : vector<8x128xf32>
    %258 = arith.addf %257, %11 : vector<8x128xf32>
    %259 = vector.extract_strided_slice %258 {offsets = [0, 0], sizes = [8, 32], strides = [1, 1]} : vector<8x128xf32> to vector<8x32xf32>
    %260 = vector.extract_strided_slice %258 {offsets = [0, 32], sizes = [8, 32], strides = [1, 1]} : vector<8x128xf32> to vector<8x32xf32>
    %261 = vector.extract_strided_slice %258 {offsets = [0, 64], sizes = [8, 32], strides = [1, 1]} : vector<8x128xf32> to vector<8x32xf32>
    %262 = vector.extract_strided_slice %258 {offsets = [0, 96], sizes = [8, 32], strides = [1, 1]} : vector<8x128xf32> to vector<8x32xf32>
    %263 = arith.mulf %260, %249 : vector<8x32xf32>
    %264 = arith.mulf %259, %261 : vector<8x32xf32>
    %265 = arith.addf %263, %264 : vector<8x32xf32>
    %266 = math.tanh %265 : vector<8x32xf32>
    %267 = arith.mulf %262, %266 : vector<8x32xf32>
    %c48_83 = arith.constant 48 : index
    %c0_84 = arith.constant 0 : index
    %268 = vector.load %arg12[%c48_83, %c0_84] : memref<64x128xf32, #tpu.memory_space<vmem>>, vector<8x128xf32>
    %cst_85 = arith.constant dense<0.000000e+00> : vector<8x128xf32>
    %269 = tpu.matmul %267, %163, %cst_85 {dimension_numbers = #tpu.dot_dimension_numbers<[1], [0], [0], [1], [0, 0, 1, 1], [], []>} : vector<8x32xf32>, vector<32x128xf32>, vector<8x128xf32> -> vector<8x128xf32>
    %270 = arith.addf %268, %269 : vector<8x128xf32>
    %271 = arith.mulf %270, %8 : vector<8x128xf32>
    %272 = math.tanh %271 : vector<8x128xf32>
    %273 = arith.mulf %272, %8 : vector<8x128xf32>
    %274 = arith.addf %273, %11 : vector<8x128xf32>
    %275 = vector.extract_strided_slice %274 {offsets = [0, 0], sizes = [8, 32], strides = [1, 1]} : vector<8x128xf32> to vector<8x32xf32>
    %276 = vector.extract_strided_slice %274 {offsets = [0, 32], sizes = [8, 32], strides = [1, 1]} : vector<8x128xf32> to vector<8x32xf32>
    %277 = vector.extract_strided_slice %274 {offsets = [0, 64], sizes = [8, 32], strides = [1, 1]} : vector<8x128xf32> to vector<8x32xf32>
    %278 = vector.extract_strided_slice %274 {offsets = [0, 96], sizes = [8, 32], strides = [1, 1]} : vector<8x128xf32> to vector<8x32xf32>
    %279 = arith.mulf %276, %265 : vector<8x32xf32>
    %280 = arith.mulf %275, %277 : vector<8x32xf32>
    %281 = arith.addf %279, %280 : vector<8x32xf32>
    %282 = math.tanh %281 : vector<8x32xf32>
    %283 = arith.mulf %278, %282 : vector<8x32xf32>
    %c56_86 = arith.constant 56 : index
    %c0_87 = arith.constant 0 : index
    %284 = vector.load %arg12[%c56_86, %c0_87] : memref<64x128xf32, #tpu.memory_space<vmem>>, vector<8x128xf32>
    %cst_88 = arith.constant dense<0.000000e+00> : vector<8x128xf32>
    %285 = tpu.matmul %283, %163, %cst_88 {dimension_numbers = #tpu.dot_dimension_numbers<[1], [0], [0], [1], [0, 0, 1, 1], [], []>} : vector<8x32xf32>, vector<32x128xf32>, vector<8x128xf32> -> vector<8x128xf32>
    %286 = arith.addf %284, %285 : vector<8x128xf32>
    %287 = arith.mulf %286, %8 : vector<8x128xf32>
    %288 = math.tanh %287 : vector<8x128xf32>
    %289 = arith.mulf %288, %8 : vector<8x128xf32>
    %290 = arith.addf %289, %11 : vector<8x128xf32>
    %291 = vector.extract_strided_slice %290 {offsets = [0, 0], sizes = [8, 32], strides = [1, 1]} : vector<8x128xf32> to vector<8x32xf32>
    %292 = vector.extract_strided_slice %290 {offsets = [0, 32], sizes = [8, 32], strides = [1, 1]} : vector<8x128xf32> to vector<8x32xf32>
    %293 = vector.extract_strided_slice %290 {offsets = [0, 64], sizes = [8, 32], strides = [1, 1]} : vector<8x128xf32> to vector<8x32xf32>
    %294 = vector.extract_strided_slice %290 {offsets = [0, 96], sizes = [8, 32], strides = [1, 1]} : vector<8x128xf32> to vector<8x32xf32>
    %295 = arith.mulf %292, %281 : vector<8x32xf32>
    %296 = arith.mulf %291, %293 : vector<8x32xf32>
    %297 = arith.addf %295, %296 : vector<8x32xf32>
    %298 = math.tanh %297 : vector<8x32xf32>
    %299 = arith.mulf %294, %298 : vector<8x32xf32>
    %c0_89 = arith.constant 0 : index
    %c0_90 = arith.constant 0 : index
    %300 = vector.load %arg8[%c0_89, %c0_90] : memref<1x32xf32, #tpu.memory_space<vmem>>, vector<1x32xf32>
    %301 = vector.broadcast %300 : vector<1x32xf32> to vector<8x32xf32>
    %302 = arith.mulf %299, %301 : vector<8x32xf32>
    %cst_91 = arith.constant dense<0.000000e+00> : vector<8xf32>
    %303 = vector.multi_reduction <add>, %302, %cst_91 [1] : vector<8x32xf32> to vector<8xf32>
    %304 = vector.shape_cast %303 : vector<8xf32> to vector<8x1xf32>
    %c0_92 = arith.constant 0 : index
    %c0_93 = arith.constant 0 : index
    %305 = vector.load %arg9[%c0_92, %c0_93] : memref<1x1xf32, #tpu.memory_space<vmem>>, vector<1x1xf32>
    %306 = vector.broadcast %305 : vector<1x1xf32> to vector<8x1xf32>
    %307 = arith.addf %304, %306 : vector<8x1xf32>
    %c0_94 = arith.constant 0 : index
    %c0_95 = arith.constant 0 : index
    %308 = vector.load %arg10[%c0_94, %c0_95] : memref<8x1xf32, #tpu.memory_space<vmem>>, vector<8x1xf32>
    tpu.vector_store %arg10[%c0_94, %c0_95], %307 {strides = array<i32>} : memref<8x1xf32, #tpu.memory_space<vmem>>, vector<8x1xf32>,
    return
  }
  func.func @transform_0(%arg0: i32) -> (i32, i32, i32) {
    %c0_i32 = arith.constant 0 : i32
    %c0_i32_0 = arith.constant 0 : i32
    %c0_i32_1 = arith.constant 0 : i32
    return %arg0, %c0_i32, %c0_i32_0 : i32, i32, i32
  }
  func.func @transform_1(%arg0: i32) -> (i32, i32) {
    %c0_i32 = arith.constant 0 : i32
    %c0_i32_0 = arith.constant 0 : i32
    %c0_i32_1 = arith.constant 0 : i32
    return %c0_i32, %c0_i32_0 : i32, i32
  }
  func.func @transform_2(%arg0: i32) -> (i32, i32) {
    %c0_i32 = arith.constant 0 : i32
    %c0_i32_0 = arith.constant 0 : i32
    %c0_i32_1 = arith.constant 0 : i32
    return %c0_i32, %c0_i32_0 : i32, i32
  }
  func.func @transform_3(%arg0: i32) -> (i32, i32) {
    %c0_i32 = arith.constant 0 : i32
    %c0_i32_0 = arith.constant 0 : i32
    %c0_i32_1 = arith.constant 0 : i32
    return %c0_i32, %c0_i32_0 : i32, i32
  }
  func.func @transform_4(%arg0: i32) -> (i32, i32, i32) {
    %c0_i32 = arith.constant 0 : i32
    %c0_i32_0 = arith.constant 0 : i32
    %c0_i32_1 = arith.constant 0 : i32
    %c0_i32_2 = arith.constant 0 : i32
    return %c0_i32, %c0_i32_0, %c0_i32_1 : i32, i32, i32
  }
  func.func @transform_5(%arg0: i32) -> (i32, i32, i32) {
    %c0_i32 = arith.constant 0 : i32
    %c0_i32_0 = arith.constant 0 : i32
    %c0_i32_1 = arith.constant 0 : i32
    %c0_i32_2 = arith.constant 0 : i32
    return %c0_i32, %c0_i32_0, %c0_i32_1 : i32, i32, i32
  }
  func.func @transform_6(%arg0: i32) -> (i32, i32, i32) {
    %c0_i32 = arith.constant 0 : i32
    %c0_i32_0 = arith.constant 0 : i32
    %c0_i32_1 = arith.constant 0 : i32
    %c0_i32_2 = arith.constant 0 : i32
    return %c0_i32, %c0_i32_0, %c0_i32_1 : i32, i32, i32
  }
  func.func @transform_7(%arg0: i32) -> (i32, i32) {
    %c0_i32 = arith.constant 0 : i32
    %c0_i32_0 = arith.constant 0 : i32
    %c0_i32_1 = arith.constant 0 : i32
    return %c0_i32, %c0_i32_0 : i32, i32
  }
  func.func @transform_8(%arg0: i32) -> (i32, i32) {
    %c0_i32 = arith.constant 0 : i32
    %c0_i32_0 = arith.constant 0 : i32
    %c0_i32_1 = arith.constant 0 : i32
    return %c0_i32, %c0_i32_0 : i32, i32
  }
  func.func @transform_9(%arg0: i32) -> (i32, i32) {
    %c0_i32 = arith.constant 0 : i32
    %c0_i32_0 = arith.constant 0 : i32
    return %arg0, %c0_i32 : i32, i32
  }
}

</mosaic_0001>

<llo_original>
// kernel: tpu_custom_call.1
$region0: #{tpu_custom_call.1}
  #allocation0 [shape = 'u32[]', space=smem, size = 0x4, offset = 0x4, fixed_abs, tag = 'smem constant byte address 0x4 - core index']
  #allocation1 [shape = 'u32[72,128]{1,0:T(1,128)}', space=vmem, size = 0x9000, scoped, tag = 'internal scratch']
  #allocation2 [shape = 'f32[64,32]{1,0:T(8,128)}', space=vmem, size = 0x8000, scoped, tag = 'scratch operand']
  #allocation3 [shape = 'f32[64,128]{1,0:T(8,128)}', space=vmem, size = 0x8000, scoped, tag = 'scratch operand']
  #allocation4 [shape = 'f32[1,1]{1,0:T(1,128)S(1)}', space=vmem, size = 0x200, scoped, tag = 'scoped memory for tpu_custom_call.1']
  %s0 = inlined_call_operand.vmem [shape: f32[1,64,16], index: 0, kind: input, shape index: {}]
  %s1 = inlined_call_operand.vmem [shape: f32[16,128], index: 1, kind: input, shape index: {}]
  %s2 = inlined_call_operand.vmem [shape: f32[32,128], index: 2, kind: input, shape index: {}]
  %s3 = inlined_call_operand.vmem [shape: f32[1,128], index: 3, kind: input, shape index: {}]
  %s4 = inlined_call_operand.vmem [shape: f32[1,32,128], index: 4, kind: input, shape index: {}]
  %s5 = inlined_call_operand.hbm [shape: f32[1,32,128], index: 5, kind: input, shape index: {}]
  %s6 = inlined_call_operand.vmem [shape: f32[1,1,128], index: 6, kind: input, shape index: {}]
  %s7 = inlined_call_operand.vmem [shape: f32[1,32], index: 7, kind: input, shape index: {}]
  %s8 = inlined_call_operand.<no memory space> [shape: f32[1,1], index: 8, kind: input, shape index: {}]
  %s9 = inlined_call_operand.vmem [shape: f32[8,1], index: 9, kind: output, shape index: {}]
  %s10 = sld [smem:[#allocation0]]
  $region50: #{tpu_custom_call.1} parent=0
    _
  %s12 = ssub.s32 1, %s10
  %s13 = scalar_select 0, %s12, %s10
  %v14 = vstv %s8
  %15 = vst [vmem:[#allocation4] sm:$0x1] %v14
  $region1: #{tpu_custom_call.1} parent=0
    #allocation5 [shape = 'u8[16384]{0}', space=vmem, size = 0x4000, scoped, tag = 'input window, operand 5, single buffered']
    #allocation6 [shape = 's32[1]{0}', space=sflag, size = 0x4, scoped, tag = 'scoped memory for tpu_custom_call.1']
    %16 = vsyncpa [#allocation6], 0
    // Predicated region
    $region2: #{tpu_custom_call.1} parent=1 // pred_check
      _
    $region3: #{tpu_custom_call.1} parent=1 // pred_check_branch
      %18 = sbr.rel (0) target = $region5
    $region4: #{tpu_custom_call.1} parent=1 // pred_region
      _
    $region5: #{tpu_custom_call.1} parent=1 // pred_fallthru
      _
    // Predicated region
    $region6: #{tpu_custom_call.1} parent=1 // pred_check
      _
    $region7: #{tpu_custom_call.1} parent=1 // pred_check_branch
      %20 = sbr.rel (0) target = $region9
    $region8: #{tpu_custom_call.1} parent=1 // pred_region
      _
    $region9: #{tpu_custom_call.1} parent=1 // pred_fallthru
      _
    // Predicated region
    $region10: #{tpu_custom_call.1} parent=1 // pred_check
      _
    $region11: #{tpu_custom_call.1} parent=1 // pred_check_branch
      %22 = sbr.rel (0) target = $region13
    $region12: #{tpu_custom_call.1} parent=1 // pred_region
      _
    $region13: #{tpu_custom_call.1} parent=1 // pred_fallthru
      _
    // Predicated region
    $region14: #{tpu_custom_call.1} parent=1 // pred_check
      _
    $region15: #{tpu_custom_call.1} parent=1 // pred_check_branch
      %24 = sbr.rel (0) target = $region17
    $region16: #{tpu_custom_call.1} parent=1 // pred_region
      _
    $region17: #{tpu_custom_call.1} parent=1 // pred_fallthru
      _
    // Predicated region
    $region18: #{tpu_custom_call.1} parent=1 // pred_check
      _
    $region19: #{tpu_custom_call.1} parent=1 // pred_check_branch
      %26 = sbr.rel (0) target = $region21
    $region20: #{tpu_custom_call.1} parent=1 // pred_region
      _
    $region21: #{tpu_custom_call.1} parent=1 // pred_fallthru
      _
    // Predicated region
    $region22: #{tpu_custom_call.1} parent=1 // pred_check
      _
    $region23: #{tpu_custom_call.1} parent=1 // pred_check_branch
      %28 = sbr.rel (0) target = $region25
    $region24: #{tpu_custom_call.1} parent=1 // pred_region
      %30 = vsyncadd [#allocation6], 0
      %s31 = sshll.u32 %s5, 4
      %s32 = int_to_ptr.hbm [resolvable:$true] %s31
      %s33 = sshll.u32 [#allocation5], 4
      %s34 = int_to_ptr.vmem [resolvable:$true] %s33
      %39 = dma.hbm_to_vmem [thread:$0]  %s32, 512, %s34, [#allocation6], 128, 128, 8
    $region25: #{tpu_custom_call.1} parent=1 // pred_fallthru
      _
    // Predicated region
    $region26: #{tpu_custom_call.1} parent=1 // pred_check
      _
    $region27: #{tpu_custom_call.1} parent=1 // pred_check_branch
      %41 = sbr.rel (0) target = $region29
    $region28: #{tpu_custom_call.1} parent=1 // pred_region
      _
    $region29: #{tpu_custom_call.1} parent=1 // pred_fallthru
      _
    // Predicated region
    $region30: #{tpu_custom_call.1} parent=1 // pred_check
      _
    $region31: #{tpu_custom_call.1} parent=1 // pred_check_branch
      %43 = sbr.rel (0) target = $region33
    $region32: #{tpu_custom_call.1} parent=1 // pred_region
      _
    $region33: #{tpu_custom_call.1} parent=1 // pred_fallthru
      _
    // Predicated region
    $region34: #{tpu_custom_call.1} parent=1 // pred_check
      _
    $region35: #{tpu_custom_call.1} parent=1 // pred_check_branch
      %45 = sbr.rel (0) target = $region37
    $region36: #{tpu_custom_call.1} parent=1 // pred_region
      _
    $region37: #{tpu_custom_call.1} parent=1 // pred_fallthru
      _
    // Predicated region
    $region38: #{tpu_custom_call.1} parent=1 // pred_check
      _
    $region39: #{tpu_custom_call.1} parent=1 // pred_check_branch
      %47 = sbr.rel (0) target = $region41
    $region40: #{tpu_custom_call.1} parent=1 // pred_region
      %49 = dma.done [#allocation6], 512
    $region41: #{tpu_custom_call.1} parent=1 // pred_fallthru
      _
    %v50 = vlaneseq
    %v51 = vand.u32 %v50, 127
    %vm52 = vcmp.ge.s32.totalorder %v51, 64
    %vm53 = vcmp.lt.s32.totalorder %v51, 96
    %vm54 = vmand %vm52, %vm53
    %v55 = vsel %vm54, 1.0, 0.5
    %v56 = vsel %vm54, 0.0, 0.5
    %v57 = vld [vmem:[%s0] sm:$0xff]
    %v58 = vld [vmem:[%s0 + $0x8] sm:$0xff]
    %v59 = vld [vmem:[%s0 + $0x10] sm:$0xff]
    %v60 = vld [vmem:[%s0 + $0x18] sm:$0xff]
    %v61 = vld [vmem:[%s0 + $0x20] sm:$0xff]
    %v62 = vld [vmem:[%s0 + $0x28] sm:$0xff]
    %v63 = vld [vmem:[%s0 + $0x30] sm:$0xff]
    %v64 = vld [vmem:[%s0 + $0x38] sm:$0xff]
    %v65 = vld [vmem:[%s1] sm:$0xff]
    %v66 = vld [vmem:[%s1 + $0x8] sm:$0xff]
    %v67 = vld [vmem:[%s2] sm:$0xff]
    %v68 = vld [vmem:[%s2 + $0x8] sm:$0xff]
    %v69 = vld [vmem:[%s2 + $0x10] sm:$0xff]
    %v70 = vld [vmem:[%s2 + $0x18] sm:$0xff]
    %v71 = vld [vmem:[%s3] sm:$0x1]
    %v73 = vperm.slane %v71, 0
    %vm75 = vcmask 130048
    %v77 = vsel %vm75, %v57, 0
    %v80 = vsel %vm75, %v58, 0
    %v83 = vsel %vm75, %v59, 0
    %v86 = vsel %vm75, %v60, 0
    %v89 = vsel %vm75, %v61, 0
    %v92 = vsel %vm75, %v62, 0
    %v95 = vsel %vm75, %v63, 0
    %v98 = vsel %vm75, %v64, 0
    %100 = vmatpush.msra.mxu0 0.0
    %101 = vmatpush.msra.mxu0 0.0
    %102 = vmatpush.msra.mxu0 0.0
    %103 = vmatpush.msra.mxu0 0.0
    %104 = vmatpush.msra.mxu0 0.0
    %105 = vmatpush.msra.mxu0 0.0
    %106 = vmatpush.msra.mxu0 0.0
    %107 = vmatpush.msra.mxu0 0.0
    %108 = vmatpush.msra.mxu0 0.0
    %109 = vmatpush.msra.mxu0 0.0
    %110 = vmatpush.msra.mxu0 0.0
    %111 = vmatpush.msra.mxu0 0.0
    %112 = vmatpush.msra.mxu0 0.0
    %113 = vmatpush.msra.mxu0 0.0
    %114 = vmatpush.msra.mxu0 %v66
    %115 = vmatpush.msra.mxu0 %v65
    %116 = vmatmul.f32.gmra.mxu0 %v77
    %v117 = vpop.f32.mrf.mxu0
    %v118 = vadd.f32 %v73, %v117
    %119 = vmatmul.f32.gmra.mxu0 %v80
    %v120 = vpop.f32.mrf.mxu0
    %v121 = vadd.f32 %v73, %v120
    %122 = vmatmul.f32.gmra.mxu0 %v83
    %v123 = vpop.f32.mrf.mxu0
    %v124 = vadd.f32 %v73, %v123
    %125 = vmatmul.f32.gmra.mxu0 %v86
    %v126 = vpop.f32.mrf.mxu0
    %v127 = vadd.f32 %v73, %v126
    %128 = vmatmul.f32.gmra.mxu0 %v89
    %v129 = vpop.f32.mrf.mxu0
    %v130 = vadd.f32 %v73, %v129
    %131 = vmatmul.f32.gmra.mxu0 %v92
    %v132 = vpop.f32.mrf.mxu0
    %v133 = vadd.f32 %v73, %v132
    %134 = vmatmul.f32.gmra.mxu0 %v95
    %v135 = vpop.f32.mrf.mxu0
    %v136 = vadd.f32 %v73, %v135
    %137 = vmatmul.f32.gmra.mxu0 %v98
    %v138 = vpop.f32.mrf.mxu0
    %v139 = vadd.f32 %v73, %v138
    %140 = vdwg.mxu0
    %141 = vst [vmem:[#allocation3] sm:$0xff] %v118
    %142 = vst [vmem:[#allocation3 + $0x8] sm:$0xff] %v121
    %143 = vst [vmem:[#allocation3 + $0x10] sm:$0xff] %v124
    %144 = vst [vmem:[#allocation3 + $0x18] sm:$0xff] %v127
    %145 = vst [vmem:[#allocation3 + $0x20] sm:$0xff] %v130
    %146 = vst [vmem:[#allocation3 + $0x28] sm:$0xff] %v133
    %147 = vst [vmem:[#allocation3 + $0x30] sm:$0xff] %v136
    %148 = vst [vmem:[#allocation3 + $0x38] sm:$0xff] %v139
    %v149 = vld [vmem:[#allocation3] sm:$0xff]
    %vm150 = vcmask 261120
    %v152 = vsel %vm150, 0.0, 0
    %154 = vmatpush.msra.mxu0 0.0
    %155 = vmatpush.msra.mxu0 0.0
    %156 = vmatpush.msra.mxu0 0.0
    %157 = vmatpush.msra.mxu0 0.0
    %158 = vmatpush.msra.mxu0 0.0
    %159 = vmatpush.msra.mxu0 0.0
    %160 = vmatpush.msra.mxu0 0.0
    %161 = vmatpush.msra.mxu0 0.0
    %162 = vmatpush.msra.mxu0 0.0
    %163 = vmatpush.msra.mxu0 0.0
    %164 = vmatpush.msra.mxu0 0.0
    %165 = vmatpush.msra.mxu0 0.0
    %166 = vmatpush.msra.mxu0 %v70
    %167 = vmatpush.msra.mxu0 %v69
    %168 = vmatpush.msra.mxu0 %v68
    %169 = vmatpush.msra.mxu0 %v67
    %170 = vmatmul.f32.gmra.mxu0 %v152
    %v171 = vpop.f32.mrf.mxu0
    %v172 = vadd.f32 0.0, %v171
    %173 = vdwg.mxu0
    %v174 = vadd.f32 %v149, %v172
    %v175 = vmul.f32 %v174, %v55
    %v176 = vtanh.pop %v175
    %v177 = vmul.f32 %v176, %v55
    %v178 = vadd.f32 %v177, %v56
    %v179 = vmul.f32 %v178, 0.0
    %181 = vrot.lane.b32.xlu0 %v178, 64
    %v182 = vpop.permute.xlu0 %181
    %v184 = vmul.f32 %v178, %v182
    %186 = vrot.lane.b32.xlu0 %v184, 32
    %v187 = vpop.permute.xlu0 %186
    %v189 = vadd.f32 %v179, %v187
    %v190 = vtanh.pop %v189
    %192 = vrot.lane.b32.xlu0 %v190, 64
    %v193 = vpop.permute.xlu0 %192
    %v195 = vmul.f32 %v178, %v193
    %197 = vrot.lane.b32.xlu0 %v195, 32
    %v198 = vpop.permute.xlu0 %197
    %200 = vst.msk [vmem:[#allocation2] sm:$0xff] %vm150, %v198
    %v201 = vld [vmem:[#allocation3 + $0x8] sm:$0xff]
    %v202 = vsel %vm150, %v198, 0
    %204 = vmatpush.msra.mxu0 0.0
    %205 = vmatpush.msra.mxu0 0.0
    %206 = vmatpush.msra.mxu0 0.0
    %207 = vmatpush.msra.mxu0 0.0
    %208 = vmatpush.msra.mxu0 0.0
    %209 = vmatpush.msra.mxu0 0.0
    %210 = vmatpush.msra.mxu0 0.0
    %211 = vmatpush.msra.mxu0 0.0
    %212 = vmatpush.msra.mxu0 0.0
    %213 = vmatpush.msra.mxu0 0.0
    %214 = vmatpush.msra.mxu0 0.0
    %215 = vmatpush.msra.mxu0 0.0
    %216 = vmatpush.msra.mxu0 %v70
    %217 = vmatpush.msra.mxu0 %v69
    %218 = vmatpush.msra.mxu0 %v68
    %219 = vmatpush.msra.mxu0 %v67
    %220 = vmatmul.f32.gmra.mxu0 %v202
    %v221 = vpop.f32.mrf.mxu0
    %v222 = vadd.f32 0.0, %v221
    %223 = vdwg.mxu0
    %v224 = vadd.f32 %v201, %v222
    %v225 = vmul.f32 %v224, %v55
    %v226 = vtanh.pop %v225
    %v227 = vmul.f32 %v226, %v55
    %v228 = vadd.f32 %v227, %v56
    %v229 = vmul.f32 %v228, %v189
    %231 = vrot.lane.b32.xlu0 %v228, 64
    %v232 = vpop.permute.xlu0 %231
    %v234 = vmul.f32 %v228, %v232
    %236 = vrot.lane.b32.xlu0 %v234, 32
    %v237 = vpop.permute.xlu0 %236
    %v239 = vadd.f32 %v229, %v237
    %v240 = vtanh.pop %v239
    %242 = vrot.lane.b32.xlu0 %v240, 64
    %v243 = vpop.permute.xlu0 %242
    %v245 = vmul.f32 %v228, %v243
    %247 = vrot.lane.b32.xlu0 %v245, 32
    %v248 = vpop.permute.xlu0 %247
    %250 = vst.msk [vmem:[#allocation2 + $0x8] sm:$0xff] %vm150, %v248
    %v251 = vld [vmem:[#allocation3 + $0x10] sm:$0xff]
    %v252 = vsel %vm150, %v248, 0
    %254 = vmatpush.msra.mxu0 0.0
    %255 = vmatpush.msra.mxu0 0.0
    %256 = vmatpush.msra.mxu0 0.0
    %257 = vmatpush.msra.mxu0 0.0
    %258 = vmatpush.msra.mxu0 0.0
    %259 = vmatpush.msra.mxu0 0.0
    %260 = vmatpush.msra.mxu0 0.0
    %261 = vmatpush.msra.mxu0 0.0
    %262 = vmatpush.msra.mxu0 0.0
    %263 = vmatpush.msra.mxu0 0.0
    %264 = vmatpush.msra.mxu0 0.0
    %265 = vmatpush.msra.mxu0 0.0
    %266 = vmatpush.msra.mxu0 %v70
    %267 = vmatpush.msra.mxu0 %v69
    %268 = vmatpush.msra.mxu0 %v68
    %269 = vmatpush.msra.mxu0 %v67
    %270 = vmatmul.f32.gmra.mxu0 %v252
    %v271 = vpop.f32.mrf.mxu0
    %v272 = vadd.f32 0.0, %v271
    %273 = vdwg.mxu0
    %v274 = vadd.f32 %v251, %v272
    %v275 = vmul.f32 %v274, %v55
    %v276 = vtanh.pop %v275
    %v277 = vmul.f32 %v276, %v55
    %v278 = vadd.f32 %v277, %v56
    %v279 = vmul.f32 %v278, %v239
    %281 = vrot.lane.b32.xlu0 %v278, 64
    %v282 = vpop.permute.xlu0 %281
    %v284 = vmul.f32 %v278, %v282
    %286 = vrot.lane.b32.xlu0 %v284, 32
    %v287 = vpop.permute.xlu0 %286
    %v289 = vadd.f32 %v279, %v287
    %v290 = vtanh.pop %v289
    %292 = vrot.lane.b32.xlu0 %v290, 64
    %v293 = vpop.permute.xlu0 %292
    %v295 = vmul.f32 %v278, %v293
    %297 = vrot.lane.b32.xlu0 %v295, 32
    %v298 = vpop.permute.xlu0 %297
    %300 = vst.msk [vmem:[#allocation2 + $0x10] sm:$0xff] %vm150, %v298
    %v301 = vld [vmem:[#allocation3 + $0x18] sm:$0xff]
    %v302 = vsel %vm150, %v298, 0
    %304 = vmatpush.msra.mxu0 0.0
    %305 = vmatpush.msra.mxu0 0.0
    %306 = vmatpush.msra.mxu0 0.0
    %307 = vmatpush.msra.mxu0 0.0
    %308 = vmatpush.msra.mxu0 0.0
    %309 = vmatpush.msra.mxu0 0.0
    %310 = vmatpush.msra.mxu0 0.0
    %311 = vmatpush.msra.mxu0 0.0
    %312 = vmatpush.msra.mxu0 0.0
    %313 = vmatpush.msra.mxu0 0.0
    %314 = vmatpush.msra.mxu0 0.0
    %315 = vmatpush.msra.mxu0 0.0
    %316 = vmatpush.msra.mxu0 %v70
    %317 = vmatpush.msra.mxu0 %v69
    %318 = vmatpush.msra.mxu0 %v68
    %319 = vmatpush.msra.mxu0 %v67
    %320 = vmatmul.f32.gmra.mxu0 %v302
    %v321 = vpop.f32.mrf.mxu0
    %v322 = vadd.f32 0.0, %v321
    %323 = vdwg.mxu0
    %v324 = vadd.f32 %v301, %v322
    %v325 = vmul.f32 %v324, %v55
    %v326 = vtanh.pop %v325
    %v327 = vmul.f32 %v326, %v55
    %v328 = vadd.f32 %v327, %v56
    %v329 = vmul.f32 %v328, %v289
    %331 = vrot.lane.b32.xlu0 %v328, 64
    %v332 = vpop.permute.xlu0 %331
    %v334 = vmul.f32 %v328, %v332
    %336 = vrot.lane.b32.xlu0 %v334, 32
    %v337 = vpop.permute.xlu0 %336
    %v339 = vadd.f32 %v329, %v337
    %v340 = vtanh.pop %v339
    %342 = vrot.lane.b32.xlu0 %v340, 64
    %v343 = vpop.permute.xlu0 %342
    %v345 = vmul.f32 %v328, %v343
    %347 = vrot.lane.b32.xlu0 %v345, 32
    %v348 = vpop.permute.xlu0 %347
    %350 = vst.msk [vmem:[#allocation2 + $0x18] sm:$0xff] %vm150, %v348
    %v351 = vld [vmem:[#allocation3 + $0x20] sm:$0xff]
    %v352 = vsel %vm150, %v348, 0
    %354 = vmatpush.msra.mxu0 0.0
    %355 = vmatpush.msra.mxu0 0.0
    %356 = vmatpush.msra.mxu0 0.0
    %357 = vmatpush.msra.mxu0 0.0
    %358 = vmatpush.msra.mxu0 0.0
    %359 = vmatpush.msra.mxu0 0.0
    %360 = vmatpush.msra.mxu0 0.0
    %361 = vmatpush.msra.mxu0 0.0
    %362 = vmatpush.msra.mxu0 0.0
    %363 = vmatpush.msra.mxu0 0.0
    %364 = vmatpush.msra.mxu0 0.0
    %365 = vmatpush.msra.mxu0 0.0
    %366 = vmatpush.msra.mxu0 %v70
    %367 = vmatpush.msra.mxu0 %v69
    %368 = vmatpush.msra.mxu0 %v68
    %369 = vmatpush.msra.mxu0 %v67
    %370 = vmatmul.f32.gmra.mxu0 %v352
    %v371 = vpop.f32.mrf.mxu0
    %v372 = vadd.f32 0.0, %v371
    %373 = vdwg.mxu0
    %v374 = vadd.f32 %v351, %v372
    %v375 = vmul.f32 %v374, %v55
    %v376 = vtanh.pop %v375
    %v377 = vmul.f32 %v376, %v55
    %v378 = vadd.f32 %v377, %v56
    %v379 = vmul.f32 %v378, %v339
    %381 = vrot.lane.b32.xlu0 %v378, 64
    %v382 = vpop.permute.xlu0 %381
    %v384 = vmul.f32 %v378, %v382
    %386 = vrot.lane.b32.xlu0 %v384, 32
    %v387 = vpop.permute.xlu0 %386
    %v389 = vadd.f32 %v379, %v387
    %v390 = vtanh.pop %v389
    %392 = vrot.lane.b32.xlu0 %v390, 64
    %v393 = vpop.permute.xlu0 %392
    %v395 = vmul.f32 %v378, %v393
    %397 = vrot.lane.b32.xlu0 %v395, 32
    %v398 = vpop.permute.xlu0 %397
    %400 = vst.msk [vmem:[#allocation2 + $0x20] sm:$0xff] %vm150, %v398
    %v401 = vld [vmem:[#allocation3 + $0x28] sm:$0xff]
    %v402 = vsel %vm150, %v398, 0
    %404 = vmatpush.msra.mxu0 0.0
    %405 = vmatpush.msra.mxu0 0.0
    %406 = vmatpush.msra.mxu0 0.0
    %407 = vmatpush.msra.mxu0 0.0
    %408 = vmatpush.msra.mxu0 0.0
    %409 = vmatpush.msra.mxu0 0.0
    %410 = vmatpush.msra.mxu0 0.0
    %411 = vmatpush.msra.mxu0 0.0
    %412 = vmatpush.msra.mxu0 0.0
    %413 = vmatpush.msra.mxu0 0.0
    %414 = vmatpush.msra.mxu0 0.0
    %415 = vmatpush.msra.mxu0 0.0
    %416 = vmatpush.msra.mxu0 %v70
    %417 = vmatpush.msra.mxu0 %v69
    %418 = vmatpush.msra.mxu0 %v68
    %419 = vmatpush.msra.mxu0 %v67
    %420 = vmatmul.f32.gmra.mxu0 %v402
    %v421 = vpop.f32.mrf.mxu0
    %v422 = vadd.f32 0.0, %v421
    %423 = vdwg.mxu0
    %v424 = vadd.f32 %v401, %v422
    %v425 = vmul.f32 %v424, %v55
    %v426 = vtanh.pop %v425
    %v427 = vmul.f32 %v426, %v55
    %v428 = vadd.f32 %v427, %v56
    %v429 = vmul.f32 %v428, %v389
    %431 = vrot.lane.b32.xlu0 %v428, 64
    %v432 = vpop.permute.xlu0 %431
    %v434 = vmul.f32 %v428, %v432
    %436 = vrot.lane.b32.xlu0 %v434, 32
    %v437 = vpop.permute.xlu0 %436
    %v439 = vadd.f32 %v429, %v437
    %v440 = vtanh.pop %v439
    %442 = vrot.lane.b32.xlu0 %v440, 64
    %v443 = vpop.permute.xlu0 %442
    %v445 = vmul.f32 %v428, %v443
    %447 = vrot.lane.b32.xlu0 %v445, 32
    %v448 = vpop.permute.xlu0 %447
    %450 = vst.msk [vmem:[#allocation2 + $0x28] sm:$0xff] %vm150, %v448
    %v451 = vld [vmem:[#allocation3 + $0x30] sm:$0xff]
    %v452 = vsel %vm150, %v448, 0
    %454 = vmatpush.msra.mxu0 0.0
    %455 = vmatpush.msra.mxu0 0.0
    %456 = vmatpush.msra.mxu0 0.0
    %457 = vmatpush.msra.mxu0 0.0
    %458 = vmatpush.msra.mxu0 0.0
    %459 = vmatpush.msra.mxu0 0.0
    %460 = vmatpush.msra.mxu0 0.0
    %461 = vmatpush.msra.mxu0 0.0
    %462 = vmatpush.msra.mxu0 0.0
    %463 = vmatpush.msra.mxu0 0.0
    %464 = vmatpush.msra.mxu0 0.0
    %465 = vmatpush.msra.mxu0 0.0
    %466 = vmatpush.msra.mxu0 %v70
    %467 = vmatpush.msra.mxu0 %v69
    %468 = vmatpush.msra.mxu0 %v68
    %469 = vmatpush.msra.mxu0 %v67
    %470 = vmatmul.f32.gmra.mxu0 %v452
    %v471 = vpop.f32.mrf.mxu0
    %v472 = vadd.f32 0.0, %v471
    %473 = vdwg.mxu0
    %v474 = vadd.f32 %v451, %v472
    %v475 = vmul.f32 %v474, %v55
    %v476 = vtanh.pop %v475
    %v477 = vmul.f32 %v476, %v55
    %v478 = vadd.f32 %v477, %v56
    %v479 = vmul.f32 %v478, %v439
    %481 = vrot.lane.b32.xlu0 %v478, 64
    %v482 = vpop.permute.xlu0 %481
    %v484 = vmul.f32 %v478, %v482
    %486 = vrot.lane.b32.xlu0 %v484, 32
    %v487 = vpop.permute.xlu0 %486
    %v489 = vadd.f32 %v479, %v487
    %v490 = vtanh.pop %v489
    %492 = vrot.lane.b32.xlu0 %v490, 64
    %v493 = vpop.permute.xlu0 %492
    %v495 = vmul.f32 %v478, %v493
    %497 = vrot.lane.b32.xlu0 %v495, 32
    %v498 = vpop.permute.xlu0 %497
    %500 = vst.msk [vmem:[#allocation2 + $0x30] sm:$0xff] %vm150, %v498
    %v501 = vld [vmem:[#allocation3 + $0x38] sm:$0xff]
    %v502 = vsel %vm150, %v498, 0
    %504 = vmatpush.msra.mxu0 0.0
    %505 = vmatpush.msra.mxu0 0.0
    %506 = vmatpush.msra.mxu0 0.0
    %507 = vmatpush.msra.mxu0 0.0
    %508 = vmatpush.msra.mxu0 0.0
    %509 = vmatpush.msra.mxu0 0.0
    %510 = vmatpush.msra.mxu0 0.0
    %511 = vmatpush.msra.mxu0 0.0
    %512 = vmatpush.msra.mxu0 0.0
    %513 = vmatpush.msra.mxu0 0.0
    %514 = vmatpush.msra.mxu0 0.0
    %515 = vmatpush.msra.mxu0 0.0
    %516 = vmatpush.msra.mxu0 %v70
    %517 = vmatpush.msra.mxu0 %v69
    %518 = vmatpush.msra.mxu0 %v68
    %519 = vmatpush.msra.mxu0 %v67
    %520 = vmatmul.f32.gmra.mxu0 %v502
    %v521 = vpop.f32.mrf.mxu0
    %v522 = vadd.f32 0.0, %v521
    %523 = vdwg.mxu0
    %v524 = vadd.f32 %v501, %v522
    %v525 = vmul.f32 %v524, %v55
    %v526 = vtanh.pop %v525
    %v527 = vmul.f32 %v526, %v55
    %v528 = vadd.f32 %v527, %v56
    %v529 = vmul.f32 %v528, %v489
    %531 = vrot.lane.b32.xlu0 %v528, 64
    %v532 = vpop.permute.xlu0 %531
    %v534 = vmul.f32 %v528, %v532
    %536 = vrot.lane.b32.xlu0 %v534, 32
    %v537 = vpop.permute.xlu0 %536
    %v539 = vadd.f32 %v529, %v537
    %v540 = vtanh.pop %v539
    %542 = vrot.lane.b32.xlu0 %v540, 64
    %v543 = vpop.permute.xlu0 %542
    %v545 = vmul.f32 %v528, %v543
    %547 = vrot.lane.b32.xlu0 %v545, 32
    %v548 = vpop.permute.xlu0 %547
    %550 = vst.msk [vmem:[#allocation2 + $0x38] sm:$0xff] %vm150, %v548
    %v551 = vld [vmem:[#allocation2] sm:$0xff]
    %v552 = vld [vmem:[#allocation2 + $0x8] sm:$0xff]
    %v553 = vld [vmem:[#allocation2 + $0x10] sm:$0xff]
    %v554 = vld [vmem:[#allocation2 + $0x18] sm:$0xff]
    %v555 = vld [vmem:[#allocation2 + $0x20] sm:$0xff]
    %v556 = vld [vmem:[#allocation2 + $0x28] sm:$0xff]
    %v557 = vld [vmem:[#allocation2 + $0x30] sm:$0xff]
    %v558 = vld [vmem:[#allocation2 + $0x38] sm:$0xff]
    %v559 = vld [vmem:[%s4] sm:$0xff]
    %v560 = vld [vmem:[%s4 + $0x8] sm:$0xff]
    %v561 = vld [vmem:[%s4 + $0x10] sm:$0xff]
    %v562 = vld [vmem:[%s4 + $0x18] sm:$0xff]
    %v563 = vld [vmem:[#allocation5] sm:$0xff]
    %v564 = vld [vmem:[#allocation5 + $0x8] sm:$0xff]
    %v565 = vld [vmem:[#allocation5 + $0x10] sm:$0xff]
    %v566 = vld [vmem:[#allocation5 + $0x18] sm:$0xff]
    %v567 = vld [vmem:[%s6] sm:$0x1]
    %v569 = vperm.slane %v567, 0
    %v572 = vsel %vm150, %v551, 0
    %v575 = vsel %vm150, %v552, 0
    %v578 = vsel %vm150, %v553, 0
    %v581 = vsel %vm150, %v554, 0
    %v584 = vsel %vm150, %v555, 0
    %v587 = vsel %vm150, %v556, 0
    %v590 = vsel %vm150, %v557, 0
    %v593 = vsel %vm150, %v558, 0
    %595 = vmatpush.msra.mxu0 0.0
    %596 = vmatpush.msra.mxu0 0.0
    %597 = vmatpush.msra.mxu0 0.0
    %598 = vmatpush.msra.mxu0 0.0
    %599 = vmatpush.msra.mxu0 0.0
    %600 = vmatpush.msra.mxu0 0.0
    %601 = vmatpush.msra.mxu0 0.0
    %602 = vmatpush.msra.mxu0 0.0
    %603 = vmatpush.msra.mxu0 0.0
    %604 = vmatpush.msra.mxu0 0.0
    %605 = vmatpush.msra.mxu0 0.0
    %606 = vmatpush.msra.mxu0 0.0
    %607 = vmatpush.msra.mxu0 %v562
    %608 = vmatpush.msra.mxu0 %v561
    %609 = vmatpush.msra.mxu0 %v560
    %610 = vmatpush.msra.mxu0 %v559
    %611 = vmatmul.f32.gmra.mxu0 %v572
    %v612 = vpop.f32.mrf.mxu0
    %v613 = vadd.f32 %v569, %v612
    %614 = vmatmul.f32.gmra.mxu0 %v575
    %v615 = vpop.f32.mrf.mxu0
    %v616 = vadd.f32 %v569, %v615
    %617 = vmatmul.f32.gmra.mxu0 %v578
    %v618 = vpop.f32.mrf.mxu0
    %v619 = vadd.f32 %v569, %v618
    %620 = vmatmul.f32.gmra.mxu0 %v581
    %v621 = vpop.f32.mrf.mxu0
    %v622 = vadd.f32 %v569, %v621
    %623 = vmatmul.f32.gmra.mxu0 %v584
    %v624 = vpop.f32.mrf.mxu0
    %v625 = vadd.f32 %v569, %v624
    %626 = vmatmul.f32.gmra.mxu0 %v587
    %v627 = vpop.f32.mrf.mxu0
    %v628 = vadd.f32 %v569, %v627
    %629 = vmatmul.f32.gmra.mxu0 %v590
    %v630 = vpop.f32.mrf.mxu0
    %v631 = vadd.f32 %v569, %v630
    %632 = vmatmul.f32.gmra.mxu0 %v593
    %v633 = vpop.f32.mrf.mxu0
    %v634 = vadd.f32 %v569, %v633
    %635 = vdwg.mxu0
    %636 = vst [vmem:[#allocation3] sm:$0xff] %v613
    %637 = vst [vmem:[#allocation3 + $0x8] sm:$0xff] %v616
    %638 = vst [vmem:[#allocation3 + $0x10] sm:$0xff] %v619
    %639 = vst [vmem:[#allocation3 + $0x18] sm:$0xff] %v622
    %640 = vst [vmem:[#allocation3 + $0x20] sm:$0xff] %v625
    %641 = vst [vmem:[#allocation3 + $0x28] sm:$0xff] %v628
    %642 = vst [vmem:[#allocation3 + $0x30] sm:$0xff] %v631
    %643 = vst [vmem:[#allocation3 + $0x38] sm:$0xff] %v634
    %v644 = vld [vmem:[#allocation3] sm:$0xff]
    %645 = vmatpush.msra.mxu0 0.0
    %646 = vmatpush.msra.mxu0 0.0
    %647 = vmatpush.msra.mxu0 0.0
    %648 = vmatpush.msra.mxu0 0.0
    %649 = vmatpush.msra.mxu0 0.0
    %650 = vmatpush.msra.mxu0 0.0
    %651 = vmatpush.msra.mxu0 0.0
    %652 = vmatpush.msra.mxu0 0.0
    %653 = vmatpush.msra.mxu0 0.0
    %654 = vmatpush.msra.mxu0 0.0
    %655 = vmatpush.msra.mxu0 0.0
    %656 = vmatpush.msra.mxu0 0.0
    %657 = vmatpush.msra.mxu0 %v566
    %658 = vmatpush.msra.mxu0 %v565
    %659 = vmatpush.msra.mxu0 %v564
    %660 = vmatpush.msra.mxu0 %v563
    %661 = vmatmul.f32.gmra.mxu0 %v152
    %v662 = vpop.f32.mrf.mxu0
    %v663 = vadd.f32 0.0, %v662
    %664 = vdwg.mxu0
    %v665 = vadd.f32 %v644, %v663
    %v666 = vmul.f32 %v665, %v55
    %v667 = vtanh.pop %v666
    %v668 = vmul.f32 %v667, %v55
    %v669 = vadd.f32 %v668, %v56
    %v670 = vmul.f32 %v669, 0.0
    %672 = vrot.lane.b32.xlu0 %v669, 64
    %v673 = vpop.permute.xlu0 %672
    %v675 = vmul.f32 %v669, %v673
    %677 = vrot.lane.b32.xlu0 %v675, 32
    %v678 = vpop.permute.xlu0 %677
    %v680 = vadd.f32 %v670, %v678
    %v681 = vtanh.pop %v680
    %683 = vrot.lane.b32.xlu0 %v681, 64
    %v684 = vpop.permute.xlu0 %683
    %v686 = vmul.f32 %v669, %v684
    %v687 = vld [vmem:[#allocation3 + $0x8] sm:$0xff]
    %689 = vrot.lane.b32.xlu0 %v686, 32
    %v690 = vpop.permute.xlu0 %689
    %v691 = vsel %vm150, %v690, 0
    %693 = vmatpush.msra.mxu0 0.0
    %694 = vmatpush.msra.mxu0 0.0
    %695 = vmatpush.msra.mxu0 0.0
    %696 = vmatpush.msra.mxu0 0.0
    %697 = vmatpush.msra.mxu0 0.0
    %698 = vmatpush.msra.mxu0 0.0
    %699 = vmatpush.msra.mxu0 0.0
    %700 = vmatpush.msra.mxu0 0.0
    %701 = vmatpush.msra.mxu0 0.0
    %702 = vmatpush.msra.mxu0 0.0
    %703 = vmatpush.msra.mxu0 0.0
    %704 = vmatpush.msra.mxu0 0.0
    %705 = vmatpush.msra.mxu0 %v566
    %706 = vmatpush.msra.mxu0 %v565
    %707 = vmatpush.msra.mxu0 %v564
    %708 = vmatpush.msra.mxu0 %v563
    %709 = vmatmul.f32.gmra.mxu0 %v691
    %v710 = vpop.f32.mrf.mxu0
    %v711 = vadd.f32 0.0, %v710
    %712 = vdwg.mxu0
    %v713 = vadd.f32 %v687, %v711
    %v714 = vmul.f32 %v713, %v55
    %v715 = vtanh.pop %v714
    %v716 = vmul.f32 %v715, %v55
    %v717 = vadd.f32 %v716, %v56
    %v718 = vmul.f32 %v717, %v680
    %720 = vrot.lane.b32.xlu0 %v717, 64
    %v721 = vpop.permute.xlu0 %720
    %v723 = vmul.f32 %v717, %v721
    %725 = vrot.lane.b32.xlu0 %v723, 32
    %v726 = vpop.permute.xlu0 %725
    %v728 = vadd.f32 %v718, %v726
    %v729 = vtanh.pop %v728
    %731 = vrot.lane.b32.xlu0 %v729, 64
    %v732 = vpop.permute.xlu0 %731
    %v734 = vmul.f32 %v717, %v732
    %v735 = vld [vmem:[#allocation3 + $0x10] sm:$0xff]
    %737 = vrot.lane.b32.xlu0 %v734, 32
    %v738 = vpop.permute.xlu0 %737
    %v739 = vsel %vm150, %v738, 0
    %741 = vmatpush.msra.mxu0 0.0
    %742 = vmatpush.msra.mxu0 0.0
    %743 = vmatpush.msra.mxu0 0.0
    %744 = vmatpush.msra.mxu0 0.0
    %745 = vmatpush.msra.mxu0 0.0
    %746 = vmatpush.msra.mxu0 0.0
    %747 = vmatpush.msra.mxu0 0.0
    %748 = vmatpush.msra.mxu0 0.0
    %749 = vmatpush.msra.mxu0 0.0
    %750 = vmatpush.msra.mxu0 0.0
    %751 = vmatpush.msra.mxu0 0.0
    %752 = vmatpush.msra.mxu0 0.0
    %753 = vmatpush.msra.mxu0 %v566
    %754 = vmatpush.msra.mxu0 %v565
    %755 = vmatpush.msra.mxu0 %v564
    %756 = vmatpush.msra.mxu0 %v563
    %757 = vmatmul.f32.gmra.mxu0 %v739
    %v758 = vpop.f32.mrf.mxu0
    %v759 = vadd.f32 0.0, %v758
    %760 = vdwg.mxu0
    %v761 = vadd.f32 %v735, %v759
    %v762 = vmul.f32 %v761, %v55
    %v763 = vtanh.pop %v762
    %v764 = vmul.f32 %v763, %v55
    %v765 = vadd.f32 %v764, %v56
    %v766 = vmul.f32 %v765, %v728
    %768 = vrot.lane.b32.xlu0 %v765, 64
    %v769 = vpop.permute.xlu0 %768
    %v771 = vmul.f32 %v765, %v769
    %773 = vrot.lane.b32.xlu0 %v771, 32
    %v774 = vpop.permute.xlu0 %773
    %v776 = vadd.f32 %v766, %v774
    %v777 = vtanh.pop %v776
    %779 = vrot.lane.b32.xlu0 %v777, 64
    %v780 = vpop.permute.xlu0 %779
    %v782 = vmul.f32 %v765, %v780
    %v783 = vld [vmem:[#allocation3 + $0x18] sm:$0xff]
    %785 = vrot.lane.b32.xlu0 %v782, 32
    %v786 = vpop.permute.xlu0 %785
    %v787 = vsel %vm150, %v786, 0
    %789 = vmatpush.msra.mxu0 0.0
    %790 = vmatpush.msra.mxu0 0.0
    %791 = vmatpush.msra.mxu0 0.0
    %792 = vmatpush.msra.mxu0 0.0
    %793 = vmatpush.msra.mxu0 0.0
    %794 = vmatpush.msra.mxu0 0.0
    %795 = vmatpush.msra.mxu0 0.0
    %796 = vmatpush.msra.mxu0 0.0
    %797 = vmatpush.msra.mxu0 0.0
    %798 = vmatpush.msra.mxu0 0.0
    %799 = vmatpush.msra.mxu0 0.0
    %800 = vmatpush.msra.mxu0 0.0
    %801 = vmatpush.msra.mxu0 %v566
    %802 = vmatpush.msra.mxu0 %v565
    %803 = vmatpush.msra.mxu0 %v564
    %804 = vmatpush.msra.mxu0 %v563
    %805 = vmatmul.f32.gmra.mxu0 %v787
    %v806 = vpop.f32.mrf.mxu0
    %v807 = vadd.f32 0.0, %v806
    %808 = vdwg.mxu0
    %v809 = vadd.f32 %v783, %v807
    %v810 = vmul.f32 %v809, %v55
    %v811 = vtanh.pop %v810
    %v812 = vmul.f32 %v811, %v55
    %v813 = vadd.f32 %v812, %v56
    %v814 = vmul.f32 %v813, %v776
    %816 = vrot.lane.b32.xlu0 %v813, 64
    %v817 = vpop.permute.xlu0 %816
    %v819 = vmul.f32 %v813, %v817
    %821 = vrot.lane.b32.xlu0 %v819, 32
    %v822 = vpop.permute.xlu0 %821
    %v824 = vadd.f32 %v814, %v822
    %v825 = vtanh.pop %v824
    %827 = vrot.lane.b32.xlu0 %v825, 64
    %v828 = vpop.permute.xlu0 %827
    %v830 = vmul.f32 %v813, %v828
    %v831 = vld [vmem:[#allocation3 + $0x20] sm:$0xff]
    %833 = vrot.lane.b32.xlu0 %v830, 32
    %v834 = vpop.permute.xlu0 %833
    %v835 = vsel %vm150, %v834, 0
    %837 = vmatpush.msra.mxu0 0.0
    %838 = vmatpush.msra.mxu0 0.0
    %839 = vmatpush.msra.mxu0 0.0
    %840 = vmatpush.msra.mxu0 0.0
    %841 = vmatpush.msra.mxu0 0.0
    %842 = vmatpush.msra.mxu0 0.0
    %843 = vmatpush.msra.mxu0 0.0
    %844 = vmatpush.msra.mxu0 0.0
    %845 = vmatpush.msra.mxu0 0.0
    %846 = vmatpush.msra.mxu0 0.0
    %847 = vmatpush.msra.mxu0 0.0
    %848 = vmatpush.msra.mxu0 0.0
    %849 = vmatpush.msra.mxu0 %v566
    %850 = vmatpush.msra.mxu0 %v565
    %851 = vmatpush.msra.mxu0 %v564
    %852 = vmatpush.msra.mxu0 %v563
    %853 = vmatmul.f32.gmra.mxu0 %v835
    %v854 = vpop.f32.mrf.mxu0
    %v855 = vadd.f32 0.0, %v854
    %856 = vdwg.mxu0
    %v857 = vadd.f32 %v831, %v855
    %v858 = vmul.f32 %v857, %v55
    %v859 = vtanh.pop %v858
    %v860 = vmul.f32 %v859, %v55
    %v861 = vadd.f32 %v860, %v56
    %v862 = vmul.f32 %v861, %v824
    %864 = vrot.lane.b32.xlu0 %v861, 64
    %v865 = vpop.permute.xlu0 %864
    %v867 = vmul.f32 %v861, %v865
    %869 = vrot.lane.b32.xlu0 %v867, 32
    %v870 = vpop.permute.xlu0 %869
    %v872 = vadd.f32 %v862, %v870
    %v873 = vtanh.pop %v872
    %875 = vrot.lane.b32.xlu0 %v873, 64
    %v876 = vpop.permute.xlu0 %875
    %v878 = vmul.f32 %v861, %v876
    %v879 = vld [vmem:[#allocation3 + $0x28] sm:$0xff]
    %881 = vrot.lane.b32.xlu0 %v878, 32
    %v882 = vpop.permute.xlu0 %881
    %v883 = vsel %vm150, %v882, 0
    %885 = vmatpush.msra.mxu0 0.0
    %886 = vmatpush.msra.mxu0 0.0
    %887 = vmatpush.msra.mxu0 0.0
    %888 = vmatpush.msra.mxu0 0.0
    %889 = vmatpush.msra.mxu0 0.0
    %890 = vmatpush.msra.mxu0 0.0
    %891 = vmatpush.msra.mxu0 0.0
    %892 = vmatpush.msra.mxu0 0.0
    %893 = vmatpush.msra.mxu0 0.0
    %894 = vmatpush.msra.mxu0 0.0
    %895 = vmatpush.msra.mxu0 0.0
    %896 = vmatpush.msra.mxu0 0.0
    %897 = vmatpush.msra.mxu0 %v566
    %898 = vmatpush.msra.mxu0 %v565
    %899 = vmatpush.msra.mxu0 %v564
    %900 = vmatpush.msra.mxu0 %v563
    %901 = vmatmul.f32.gmra.mxu0 %v883
    %v902 = vpop.f32.mrf.mxu0
    %v903 = vadd.f32 0.0, %v902
    %904 = vdwg.mxu0
    %v905 = vadd.f32 %v879, %v903
    %v906 = vmul.f32 %v905, %v55
    %v907 = vtanh.pop %v906
    %v908 = vmul.f32 %v907, %v55
    %v909 = vadd.f32 %v908, %v56
    %v910 = vmul.f32 %v909, %v872
    %912 = vrot.lane.b32.xlu0 %v909, 64
    %v913 = vpop.permute.xlu0 %912
    %v915 = vmul.f32 %v909, %v913
    %917 = vrot.lane.b32.xlu0 %v915, 32
    %v918 = vpop.permute.xlu0 %917
    %v920 = vadd.f32 %v910, %v918
    %v921 = vtanh.pop %v920
    %923 = vrot.lane.b32.xlu0 %v921, 64
    %v924 = vpop.permute.xlu0 %923
    %v926 = vmul.f32 %v909, %v924
    %v927 = vld [vmem:[#allocation3 + $0x30] sm:$0xff]
    %929 = vrot.lane.b32.xlu0 %v926, 32
    %v930 = vpop.permute.xlu0 %929
    %v931 = vsel %vm150, %v930, 0
    %933 = vmatpush.msra.mxu0 0.0
    %934 = vmatpush.msra.mxu0 0.0
    %935 = vmatpush.msra.mxu0 0.0
    %936 = vmatpush.msra.mxu0 0.0
    %937 = vmatpush.msra.mxu0 0.0
    %938 = vmatpush.msra.mxu0 0.0
    %939 = vmatpush.msra.mxu0 0.0
    %940 = vmatpush.msra.mxu0 0.0
    %941 = vmatpush.msra.mxu0 0.0
    %942 = vmatpush.msra.mxu0 0.0
    %943 = vmatpush.msra.mxu0 0.0
    %944 = vmatpush.msra.mxu0 0.0
    %945 = vmatpush.msra.mxu0 %v566
    %946 = vmatpush.msra.mxu0 %v565
    %947 = vmatpush.msra.mxu0 %v564
    %948 = vmatpush.msra.mxu0 %v563
    %949 = vmatmul.f32.gmra.mxu0 %v931
    %v950 = vpop.f32.mrf.mxu0
    %v951 = vadd.f32 0.0, %v950
    %952 = vdwg.mxu0
    %v953 = vadd.f32 %v927, %v951
    %v954 = vmul.f32 %v953, %v55
    %v955 = vtanh.pop %v954
    %v956 = vmul.f32 %v955, %v55
    %v957 = vadd.f32 %v956, %v56
    %v958 = vmul.f32 %v957, %v920
    %960 = vrot.lane.b32.xlu0 %v957, 64
    %v961 = vpop.permute.xlu0 %960
    %v963 = vmul.f32 %v957, %v961
    %965 = vrot.lane.b32.xlu0 %v963, 32
    %v966 = vpop.permute.xlu0 %965
    %v968 = vadd.f32 %v958, %v966
    %v969 = vtanh.pop %v968
    %971 = vrot.lane.b32.xlu0 %v969, 64
    %v972 = vpop.permute.xlu0 %971
    %v974 = vmul.f32 %v957, %v972
    %v975 = vld [vmem:[#allocation3 + $0x38] sm:$0xff]
    %977 = vrot.lane.b32.xlu0 %v974, 32
    %v978 = vpop.permute.xlu0 %977
    %v979 = vsel %vm150, %v978, 0
    %981 = vmatpush.msra.mxu0 0.0
    %982 = vmatpush.msra.mxu0 0.0
    %983 = vmatpush.msra.mxu0 0.0
    %984 = vmatpush.msra.mxu0 0.0
    %985 = vmatpush.msra.mxu0 0.0
    %986 = vmatpush.msra.mxu0 0.0
    %987 = vmatpush.msra.mxu0 0.0
    %988 = vmatpush.msra.mxu0 0.0
    %989 = vmatpush.msra.mxu0 0.0
    %990 = vmatpush.msra.mxu0 0.0
    %991 = vmatpush.msra.mxu0 0.0
    %992 = vmatpush.msra.mxu0 0.0
    %993 = vmatpush.msra.mxu0 %v566
    %994 = vmatpush.msra.mxu0 %v565
    %995 = vmatpush.msra.mxu0 %v564
    %996 = vmatpush.msra.mxu0 %v563
    %997 = vmatmul.f32.gmra.mxu0 %v979
    %v998 = vpop.f32.mrf.mxu0
    %v999 = vadd.f32 0.0, %v998
    %1000 = vdwg.mxu0
    %v1001 = vadd.f32 %v975, %v999
    %v1002 = vmul.f32 %v1001, %v55
    %v1003 = vtanh.pop %v1002
    %v1004 = vmul.f32 %v1003, %v55
    %v1005 = vadd.f32 %v1004, %v56
    %v1006 = vmul.f32 %v1005, %v968
    %1008 = vrot.lane.b32.xlu0 %v1005, 64
    %v1009 = vpop.permute.xlu0 %1008
    %v1011 = vmul.f32 %v1005, %v1009
    %1013 = vrot.lane.b32.xlu0 %v1011, 32
    %v1014 = vpop.permute.xlu0 %1013
    %v1016 = vadd.f32 %v1006, %v1014
    %v1017 = vtanh.pop %v1016
    %1019 = vrot.lane.b32.xlu0 %v1017, 64
    %v1020 = vpop.permute.xlu0 %1019
    %v1022 = vmul.f32 %v1005, %v1020
    %v1023 = vld [vmem:[%s7] sm:$0x1]
    %v1025 = vperm.slane %v1023, 0
    %1026 = vrot.lane.b32.xlu0 %v1025, 96
    %v1027 = vpop.permute.xlu0 %1026
    %v1029 = vmul.f32 %v1022, %v1027
    %1031 = vrot.lane.b32.xlu0 %v1029, 32
    %v1032 = vpop.permute.xlu0 %1031
    %v1034 = vsel %vm150, %v1032, 0.0
    %1035 = vadd.xlane.f32.xlu0 %v1034
    %v1036 = vpop.xlane.xlu0 %1035
    %v1037 = vld [vmem:[#allocation4] sm:$0x1]
    %v1039 = vperm.slane %v1037, 0
    %v1041 = vadd.f32 %v1036, %v1039
    %vm1042 = vcmask 7168
    %1043 = vst.msk [vmem:[%s9] sm:$0xff] %vm1042, %v1041
    // Predicated region
    $region42: #{tpu_custom_call.1} parent=1 // pred_check
      _
    $region43: #{tpu_custom_call.1} parent=1 // pred_check_branch
      %1045 = sbr.rel (0) target = $region45
    $region44: #{tpu_custom_call.1} parent=1 // pred_region
      _
    $region45: #{tpu_custom_call.1} parent=1 // pred_fallthru
      _
    // Predicated region
    $region46: #{tpu_custom_call.1} parent=1 // pred_check
      _
    $region47: #{tpu_custom_call.1} parent=1 // pred_check_branch
      %1047 = sbr.rel (0) target = $region49
    $region48: #{tpu_custom_call.1} parent=1 // pred_region
      _
    $region49: #{tpu_custom_call.1} parent=1 // pred_fallthru
      _
    %1048 = vsyncpa [#allocation6], 1

</llo_original>
